<compile_context>
chip_gen: v6e
topology: v6e:2x2x1
jax: 0.10.0
libtpu: 0.0.40
codegen_flags: <defaults>
</compile_context>

<pallas_src>
import functools

import jax
import jax.numpy as jnp
from jax import lax
from jax.experimental import pallas as pl
from jax.experimental.pallas import tpu as pltpu


LANE = 128        # lane width — all feature dims padded to this
SUB = 8           # sublane granularity
POOL_CHUNK = 8    # node-chunk size for the running-max pooling
LN_EPS = 1e-5


# ----------------------------- helpers ---------------------------------------


def _round_up(n, m):
    return ((n + m - 1) // m) * m


def _pad2(x, rows, cols, dtype=jnp.float32):
    x = jnp.asarray(x, jnp.float32)
    out = jnp.zeros((rows, cols), jnp.float32)
    out = out.at[: x.shape[0], : x.shape[1]].set(x)
    return out.astype(dtype)


def _pick_tile(n_pad, prefer=(512, 256, 128)):
    for t in prefer:
        if n_pad % t == 0:
            return t
    return n_pad


def _layernorm(y, gamma, beta, colmask, d_real, relu):
    """Two-pass LayerNorm over the first d_real lanes (rest are zero-padded)."""
    inv_d = jnp.float32(1.0 / d_real)
    mean = jnp.sum(y * colmask, axis=-1, keepdims=True) * inv_d
    yc = (y - mean) * colmask
    var = jnp.sum(yc * yc, axis=-1, keepdims=True) * inv_d
    out = yc * lax.rsqrt(var + LN_EPS) * gamma + beta
    if relu:
        out = jnp.maximum(out, 0.0)
    return out


# ----------------------------- fused kernel ----------------------------------


def _fused_kernel(a_ref, x_ref, mask_ref, pi_ref, convw_ref, wg_ref, wp_ref,
                  wf_ref, vecs_ref, out_ref, h_ref, acc_ref, pooled_ref, *,
                  n_layers, n_pad, tile_m, tile_k,
                  d_graph_emb, d_pi_emb, n_classes):
    l = pl.program_id(0)           # GCN layer
    i = pl.program_id(1)           # output row tile (nodes)
    k = pl.program_id(2)           # contraction tile (nodes)
    n_i = pl.num_programs(1)
    n_k = pl.num_programs(2)

    # Double-buffered node-feature slab: read slot = l % 2, write slot = other.
    read_base = (l & 1) * n_pad
    write_base = (1 - (l & 1)) * n_pad

    # ---- one-time init (very first grid step): seed layer-0 input, zero pool.
    @pl.when((l == 0) & (i == 0) & (k == 0))
    def _init():
        pooled_ref[...] = jnp.zeros_like(pooled_ref)
        h_ref[0:n_pad, :] = x_ref[...]

    # ---- zero the (A @ h) accumulator at the start of each contraction.
    @pl.when(k == 0)
    def _zero_acc():
        acc_ref[...] = jnp.zeros_like(acc_ref)

    # ---- accumulate A[i-tile, k-tile] @ h[k-tile]   (bf16 MXU, f32 acc).
    r_start = pl.multiple_of(read_base + k * tile_k, 128)
    h_tile = h_ref[pl.ds(r_start, tile_k), :]                      # bf16
    acc_ref[...] += jnp.dot(a_ref[...], h_tile,
                            preferred_element_type=jnp.float32)

    # ---- finish this row tile of the layer: (A@h) @ W + b, ReLU, store, pool.
    @pl.when(k == n_k - 1)
    def _finish_tile():
        w = convw_ref[0]                                           # (LANE, LANE) bf16
        b = vecs_ref[pl.ds(l, 1), :]                               # (1, LANE) f32
        h_new = jnp.dot(acc_ref[...].astype(jnp.bfloat16), w,
                        preferred_element_type=jnp.float32) + b
        h_new = jnp.maximum(h_new, 0.0)                            # f32
        w_start = pl.multiple_of(write_base + i * tile_m, 128)
        h_ref[pl.ds(w_start, tile_m), :] = h_new.astype(jnp.bfloat16)

        # Running masked max-pool into pooled[l].  JK features are post-ReLU
        # (>= 0), so 0.0 is an exact masked sentinel; mask is {0,1} -> multiply.
        def pool_body(c, acc):
            s = pl.multiple_of(c * POOL_CHUNK, POOL_CHUNK)
            h_c = h_ref[pl.ds(w_start + s, POOL_CHUNK), :].astype(jnp.float32)
            m_c = mask_ref[pl.ds(s, POOL_CHUNK), :].astype(jnp.float32)
            vals = m_c[:, :, None] * h_c[:, None, :]               # (8, G, LANE)
            return jnp.maximum(acc, jnp.max(vals, axis=0))

        pooled_ref[l] = lax.fori_loop(0, tile_m // POOL_CHUNK, pool_body,
                                      pooled_ref[l])

    # ---- head (graph / pi / fc blocks) at the very last grid step.
    @pl.when((l == n_layers - 1) & (i == n_i - 1) & (k == n_k - 1))
    def _head():
        base = n_layers                              # vec-slab row offsets
        g_pad = pi_ref.shape[0]

        # graph block: Linear over the JK concat == sum_l pooled[l] @ Wg[l]
        g_pre = jnp.zeros((g_pad, LANE), jnp.float32)
        for ll in range(n_layers):                   # static unroll (n_layers small)
            g_pre = g_pre + jnp.dot(pooled_ref[ll].astype(jnp.bfloat16),
                                    wg_ref[ll],
                                    preferred_element_type=jnp.float32)
        g_emb = _layernorm(g_pre + vecs_ref[base + 0:base + 1, :],
                           vecs_ref[base + 1:base + 2, :],
                           vecs_ref[base + 2:base + 3, :],
                           vecs_ref[base + 3:base + 4, :],
                           d_graph_emb, relu=True)

        # pi block
        p_pre = jnp.dot(pi_ref[...].astype(jnp.bfloat16), wp_ref[...],
                        preferred_element_type=jnp.float32)
        p_emb = _layernorm(p_pre + vecs_ref[base + 4:base + 5, :],
                           vecs_ref[base + 5:base + 6, :],
                           vecs_ref[base + 6:base + 7, :],
                           vecs_ref[base + 7:base + 8, :],
                           d_pi_emb, relu=True)

        # fc block: Linear -> LayerNorm -> Dropout(id); no ReLU.
        feat = jnp.concatenate([g_emb, p_emb], axis=1)             # (G, 2*LANE)
        f_pre = jnp.dot(feat.astype(jnp.bfloat16), wf_ref[...],
                        preferred_element_type=jnp.float32)
        out_ref[...] = _layernorm(f_pre + vecs_ref[base + 8:base + 9, :],
                                  vecs_ref[base + 9:base + 10, :],
                                  vecs_ref[base + 10:base + 11, :],
                                  vecs_ref[base + 11:base + 12, :],
                                  n_classes, relu=False)


# ----------------------------- wrapper ----------------------------------------


def single_gcn_forward(params, a_norm, x, mask, pi, *, n_classes,
                       dim_graph_embedding, dim_pers_embedding):
    n_nodes = x.shape[0]
    n_graphs = mask.shape[0]
    n_layers = len(params["convs"])
    dim_node_hidden = params["convs"][0][0].shape[1]

    n_pad = _round_up(max(n_nodes, LANE), LANE)          # lane-dense A
    g_pad = _round_up(max(n_graphs, SUB), SUB)
    tile_m = _pick_tile(n_pad)
    tile_k = _pick_tile(n_pad)
    n_i = n_pad // tile_m
    n_k = n_pad // tile_k
    grid = (n_layers, n_i, n_k)

    # ---- inputs: lane-dense padding; bf16 MXU operands, bf16 mask.
    a_p = _pad2(a_norm, n_pad, n_pad, jnp.bfloat16)
    x_p = _pad2(x, n_pad, LANE, jnp.bfloat16)
    mask_t_p = _pad2(jnp.asarray(mask).T, n_pad, g_pad, jnp.bfloat16)
    pi_p = _pad2(pi, g_pad, LANE, jnp.float32)

    # ---- stacked conv weights (bf16).
    convw = jnp.zeros((n_layers, LANE, LANE), jnp.float32)
    for l, (w, _b) in enumerate(params["convs"]):
        convw = convw.at[l, :w.shape[0], :w.shape[1]].set(jnp.asarray(w, jnp.float32))
    convw = convw.astype(jnp.bfloat16)

    # ---- graph-block weight, split into per-layer (LANE, LANE) slices (bf16).
    wg, bg, gg, betag = params["graph_block"]
    wg = jnp.asarray(wg, jnp.float32)
    wg_st = jnp.zeros((n_layers, LANE, LANE), jnp.float32)
    for l in range(n_layers):
        wg_st = wg_st.at[l, :dim_node_hidden, :dim_graph_embedding].set(
            wg[l * dim_node_hidden:(l + 1) * dim_node_hidden, :])
    wg_st = wg_st.astype(jnp.bfloat16)

    wp, bp, gp, betap = params["pi_block"]
    wp_p = _pad2(wp, LANE, LANE, jnp.bfloat16)

    wf, bf_, gf, betaf = params["fc_block"]
    wf = jnp.asarray(wf, jnp.float32)
    wf_p = jnp.zeros((2 * LANE, LANE), jnp.float32)
    wf_p = wf_p.at[:dim_graph_embedding, :n_classes].set(wf[:dim_graph_embedding, :])
    wf_p = wf_p.at[LANE:LANE + dim_pers_embedding, :n_classes].set(
        wf[dim_graph_embedding:dim_graph_embedding + dim_pers_embedding, :])
    wf_p = wf_p.astype(jnp.bfloat16)

    # ---- pack all small per-feature vectors (biases/gamma/beta/col-masks)
    #      into ONE f32 slab -> one DMA descriptor instead of ~12.
    n_vec_rows = n_layers + 12
    r_pad = _round_up(n_vec_rows, SUB)
    vecs = jnp.zeros((r_pad, LANE), jnp.float32)

    def _vrow(v, d):
        v = jnp.asarray(v, jnp.float32).reshape(-1)[:d]
        return jnp.zeros((LANE,), jnp.float32).at[:d].set(v)

    for l, (_w, b) in enumerate(params["convs"]):
        vecs = vecs.at[l].set(_vrow(b, b.shape[-1]))
    base = n_layers
    vecs = vecs.at[base + 0].set(_vrow(bg, dim_graph_embedding))
    vecs = vecs.at[base + 1].set(_vrow(gg, dim_graph_embedding))
    vecs = vecs.at[base + 2].set(_vrow(betag, dim_graph_embedding))
    vecs = vecs.at[base + 3].set(_vrow(jnp.ones((dim_graph_embedding,)), dim_graph_embedding))
    vecs = vecs.at[base + 4].set(_vrow(bp, dim_pers_embedding))
    vecs = vecs.at[base + 5].set(_vrow(gp, dim_pers_embedding))
    vecs = vecs.at[base + 6].set(_vrow(betap, dim_pers_embedding))
    vecs = vecs.at[base + 7].set(_vrow(jnp.ones((dim_pers_embedding,)), dim_pers_embedding))
    vecs = vecs.at[base + 8].set(_vrow(bf_, n_classes))
    vecs = vecs.at[base + 9].set(_vrow(gf, n_classes))
    vecs = vecs.at[base + 10].set(_vrow(betaf, n_classes))
    vecs = vecs.at[base + 11].set(_vrow(jnp.ones((n_classes,)), n_classes))

    kernel = functools.partial(
        _fused_kernel, n_layers=n_layers, n_pad=n_pad, tile_m=tile_m,
        tile_k=tile_k, d_graph_emb=dim_graph_embedding,
        d_pi_emb=dim_pers_embedding, n_classes=n_classes)

    in_specs = [
        pl.BlockSpec((tile_m, tile_k), lambda l, i, k: (i, k)),         # A (bf16, tiled)
        pl.BlockSpec((n_pad, LANE), lambda l, i, k: (0, 0)),            # x (bf16)
        pl.BlockSpec((tile_m, g_pad), lambda l, i, k: (i, 0)),          # mask^T (bf16)
        pl.BlockSpec((g_pad, LANE), lambda l, i, k: (0, 0)),            # pi (f32)
        pl.BlockSpec((1, LANE, LANE), lambda l, i, k: (l, 0, 0)),       # conv W_l (bf16)
        pl.BlockSpec((n_layers, LANE, LANE), lambda l, i, k: (0, 0, 0)),  # Wg (bf16)
        pl.BlockSpec((LANE, LANE), lambda l, i, k: (0, 0)),             # Wp (bf16)
        pl.BlockSpec((2 * LANE, LANE), lambda l, i, k: (0, 0)),         # Wf (bf16)
        pl.BlockSpec((r_pad, LANE), lambda l, i, k: (0, 0)),            # vec slab (f32)
    ]
    out_spec = pl.BlockSpec((g_pad, LANE), lambda l, i, k: (0, 0))

    scratch = [
        pltpu.VMEM((2 * n_pad, LANE), jnp.bfloat16),        # double-buffered node feats
        pltpu.VMEM((tile_m, LANE), jnp.float32),            # (A @ h) accumulator
        pltpu.VMEM((n_layers, g_pad, LANE), jnp.float32),   # running max-pool per layer
    ]

    # ---- explicit VMEM budget (also fits v7x's 64 MiB physical VMEM).
    resident = (2 * (tile_m * tile_k + tile_m * g_pad + LANE * LANE) * 2
                + x_p.size * 2 + pi_p.size * 4 + wg_st.size * 2 + wp_p.size * 2
                + wf_p.size * 2 + vecs.size * 4
                + 2 * n_pad * LANE * 2 + tile_m * LANE * 4
                + n_layers * g_pad * LANE * 4 + 2 * g_pad * LANE * 4)
    vmem_limit = int(min(max(2 * resident, 8 << 20), 64 << 20))

    flops = (2 * n_layers * (n_pad * n_pad * LANE + n_pad * LANE * LANE)
             + 2 * g_pad * LANE * LANE * (n_layers + 3))
    bytes_accessed = int(a_p.size * 2 * n_layers + x_p.size * 2
                         + mask_t_p.size * 2 * n_layers + pi_p.size * 4
                         + convw.size * 2 + wg_st.size * 2 + wp_p.size * 2
                         + wf_p.size * 2 + vecs.size * 4 + g_pad * LANE * 4)

    out_p = pl.pallas_call(
        kernel,
        out_shape=jax.ShapeDtypeStruct((g_pad, LANE), jnp.float32),
        grid_spec=pltpu.PrefetchScalarGridSpec(
            num_scalar_prefetch=0, grid=grid, in_specs=in_specs,
            out_specs=out_spec, scratch_shapes=scratch),
        compiler_params=pltpu.CompilerParams(
            # Row tiles can't be 'parallel': layer l+1 needs every row tile of
            # layer l through the single-core VMEM feature slab.
            dimension_semantics=("arbitrary", "arbitrary", "arbitrary"),
            vmem_limit_bytes=vmem_limit),
        cost_estimate=pl.CostEstimate(flops=flops, transcendentals=3 * g_pad,
                                      bytes_accessed=bytes_accessed),
    )(a_p, x_p, mask_t_p, pi_p, convw, wg_st, wp_p, wf_p, vecs)

    return out_p[:n_graphs, :n_classes]


# ------------------------------- main -----------------------------------------


if __name__ == "__main__":
    # Model hyper-parameters (small, consistent with the module's __init__)
    dim_node_feat = 4
    dim_pers_feat = 6
    n_classes = 3
    dim_node_hidden = 8
    dim_pers_embedding = 8
    dim_graph_embedding = 16
    n_graph_layers = 2

    n_graphs = 2
    n_nodes = 10  # 5 nodes per graph

    key = jax.random.PRNGKey(0)
    ks = jax.random.split(key, 16)

    # --- inputs (a toy "data" batch of 2 graphs) ---
    x = jax.random.normal(ks[0], (n_nodes, dim_node_feat), jnp.float32)
    pi = jax.random.normal(ks[1], (n_graphs, dim_pers_feat), jnp.float32)
    batch = jnp.array([0] * 5 + [1] * 5, jnp.int32)
    src = jnp.array([0, 1, 1, 2, 3, 4, 5, 6, 6, 7, 8, 9], jnp.int32)
    dst = jnp.array([1, 0, 2, 1, 4, 3, 6, 5, 7, 6, 9, 8], jnp.int32)

    # GCN symmetric normalization with self-loops (plain-JAX glue)
    adj = jnp.zeros((n_nodes, n_nodes), jnp.float32).at[src, dst].add(1.0)
    adj = adj + jnp.eye(n_nodes, dtype=jnp.float32)
    deg = jnp.sum(adj, axis=1)
    dinv = 1.0 / jnp.sqrt(deg)
    a_norm = adj * dinv[:, None] * dinv[None, :]

    # dense per-graph node mask for global_max_pool
    mask = (batch[None, :] == jnp.arange(n_graphs, dtype=jnp.int32)[:, None]).astype(jnp.float32)

    # --- deterministic parameter init ---
    def lin_init(k, din, dout, scale=0.2):
        return (scale * jax.random.normal(k, (din, dout), jnp.float32),
                jnp.zeros((1, dout), jnp.float32))

    convs = []
    d_in = dim_node_feat
    for i in range(n_graph_layers):
        w, b = lin_init(ks[2 + i], d_in, dim_node_hidden)
        convs.append((w, b))
        d_in = dim_node_hidden

    jk_dim = n_graph_layers * dim_node_hidden
    wg, bg = lin_init(ks[6], jk_dim, dim_graph_embedding)
    gg, betag = (jnp.ones((1, dim_graph_embedding), jnp.float32),
                 jnp.zeros((1, dim_graph_embedding), jnp.float32))

    wp, bp = lin_init(ks[7], dim_pers_feat, dim_pers_embedding)
    gp, betap = (jnp.ones((1, dim_pers_embedding), jnp.float32),
                 jnp.zeros((1, dim_pers_embedding), jnp.float32))

    fc_in = dim_graph_embedding + dim_pers_embedding
    wf, bf = lin_init(ks[8], fc_in, n_classes)
    gf, betaf = (jnp.ones((1, n_classes), jnp.float32),
                 jnp.zeros((1, n_classes), jnp.float32))

    params = {
        "convs": convs,
        "graph_block": (wg, bg, gg, betag),
        "pi_block": (wp, bp, gp, betap),
        "fc_block": (wf, bf, gf, betaf),
    }

    out = single_gcn_forward(params, a_norm, x, mask, pi,
                             n_classes=n_classes,
                             dim_graph_embedding=dim_graph_embedding,
                             dim_pers_embedding=dim_pers_embedding)
    jax.block_until_ready(out)
    assert out.shape == (n_graphs, n_classes)
    print("KERNEL_OK")
</pallas_src>

<mosaic_0001>
module attributes {stable_mosaic.version = 11 : i64} {
  func.func @_fused_kernel(%arg0: i32, %arg1: i32, %arg2: i32, %arg3: memref<128x128xbf16, #tpu.memory_space<vmem>>, %arg4: memref<128x128xbf16, #tpu.memory_space<vmem>>, %arg5: memref<128x8xbf16, #tpu.memory_space<vmem>>, %arg6: memref<8x128xf32, #tpu.memory_space<vmem>>, %arg7: memref<1x128x128xbf16, #tpu.memory_space<vmem>>, %arg8: memref<2x128x128xbf16, #tpu.memory_space<vmem>>, %arg9: memref<128x128xbf16, #tpu.memory_space<vmem>>, %arg10: memref<256x128xbf16, #tpu.memory_space<vmem>>, %arg11: memref<16x128xf32, #tpu.memory_space<vmem>>, %arg12: memref<8x128xf32, #tpu.memory_space<vmem>>, %arg13: memref<256x128xbf16, #tpu.memory_space<vmem>>, %arg14: memref<128x128xf32, #tpu.memory_space<vmem>>, %arg15: memref<2x8x128xf32, #tpu.memory_space<vmem>>) attributes {dimension_semantics = [#tpu.dimension_semantics<arbitrary>, #tpu.dimension_semantics<arbitrary>, #tpu.dimension_semantics<arbitrary>], iteration_bounds = array<i64: 2, 1, 1>, scalar_prefetch = 0 : i64, scratch_operands = 3 : i64, tpu.core_type = #tpu.core_type<tc>, window_params = [{transform_indices = @transform_0, window_bounds = array<i64: 128, 128>}, {pipeline_mode = #tpu.pipeline_mode<synchronous>, transform_indices = @transform_1, window_bounds = array<i64: 128, 128>}, {transform_indices = @transform_2, window_bounds = array<i64: 128, 8>}, {pipeline_mode = #tpu.pipeline_mode<synchronous>, transform_indices = @transform_3, window_bounds = array<i64: 8, 128>}, {transform_indices = @transform_4, window_bounds = array<i64: 1, 128, 128>}, {pipeline_mode = #tpu.pipeline_mode<synchronous>, transform_indices = @transform_5, window_bounds = array<i64: 2, 128, 128>}, {pipeline_mode = #tpu.pipeline_mode<synchronous>, transform_indices = @transform_6, window_bounds = array<i64: 128, 128>}, {pipeline_mode = #tpu.pipeline_mode<synchronous>, transform_indices = @transform_7, window_bounds = array<i64: 256, 128>}, {pipeline_mode = #tpu.pipeline_mode<synchronous>, transform_indices = @transform_8, window_bounds = array<i64: 16, 128>}, {pipeline_mode = #tpu.pipeline_mode<synchronous>, transform_indices = @transform_9, window_bounds = array<i64: 8, 128>}]} {
    %c1_i32 = arith.constant 1 : i32
    %0 = arith.andi %arg0, %c1_i32 : i32
    %c128_i32 = arith.constant 128 : i32
    %1 = arith.muli %0, %c128_i32 : i32
    %c1_i32_0 = arith.constant 1 : i32
    %2 = arith.andi %arg0, %c1_i32_0 : i32
    %c1_i32_1 = arith.constant 1 : i32
    %3 = arith.subi %c1_i32_1, %2 : i32
    %c128_i32_2 = arith.constant 128 : i32
    %4 = arith.muli %3, %c128_i32_2 : i32
    %c0_i32 = arith.constant 0 : i32
    %5 = arith.cmpi eq, %arg0, %c0_i32 : i32
    %c0_i32_3 = arith.constant 0 : i32
    %6 = arith.cmpi eq, %arg1, %c0_i32_3 : i32
    %7 = arith.andi %5, %6 : i1
    %c0_i32_4 = arith.constant 0 : i32
    %8 = arith.cmpi eq, %arg2, %c0_i32_4 : i32
    %9 = arith.andi %7, %8 : i1
    %10 = arith.extui %9 : i1 to i32
    %c0_i32_5 = arith.constant 0 : i32
    %11 = arith.cmpi ne, %10, %c0_i32_5 : i32
    scf.if %11 {
      %cst_21 = arith.constant 0.000000e+00 : f32
      %35 = vector.broadcast %cst_21 : f32 to vector<2x8x128xf32>
      %c0_22 = arith.constant 0 : index
      %c0_23 = arith.constant 0 : index
      %c0_24 = arith.constant 0 : index
      %36 = vector.load %arg15[%c0_22, %c0_23, %c0_24] : memref<2x8x128xf32, #tpu.memory_space<vmem>>, vector<2x8x128xf32>
      tpu.vector_store %arg15[%c0_22, %c0_23, %c0_24], %35 {strides = array<i32>} : memref<2x8x128xf32, #tpu.memory_space<vmem>>, vector<2x8x128xf32>,
      %c0_25 = arith.constant 0 : index
      %c0_26 = arith.constant 0 : index
      %37 = vector.load %arg4[%c0_25, %c0_26] : memref<128x128xbf16, #tpu.memory_space<vmem>>, vector<128x128xbf16>
      %c0_27 = arith.constant 0 : index
      %c0_28 = arith.constant 0 : index
      %38 = vector.load %arg13[%c0_27, %c0_28] : memref<256x128xbf16, #tpu.memory_space<vmem>>, vector<128x128xbf16>
      tpu.vector_store %arg13[%c0_27, %c0_28], %37 {strides = array<i32>} : memref<256x128xbf16, #tpu.memory_space<vmem>>, vector<128x128xbf16>,
    } else {
    }
    %c0_i32_6 = arith.constant 0 : i32
    %12 = arith.cmpi eq, %arg2, %c0_i32_6 : i32
    %13 = arith.extui %12 : i1 to i32
    %c0_i32_7 = arith.constant 0 : i32
    %14 = arith.cmpi ne, %13, %c0_i32_7 : i32
    scf.if %14 {
      %cst_21 = arith.constant 0.000000e+00 : f32
      %35 = vector.broadcast %cst_21 : f32 to vector<128x128xf32>
      %c0_22 = arith.constant 0 : index
      %c0_23 = arith.constant 0 : index
      %36 = vector.load %arg14[%c0_22, %c0_23] : memref<128x128xf32, #tpu.memory_space<vmem>>, vector<128x128xf32>
      tpu.vector_store %arg14[%c0_22, %c0_23], %35 {strides = array<i32>} : memref<128x128xf32, #tpu.memory_space<vmem>>, vector<128x128xf32>,
    } else {
    }
    %c128_i32_8 = arith.constant 128 : i32
    %15 = arith.muli %arg2, %c128_i32_8 : i32
    %16 = arith.addi %1, %15 : i32
    %17 = tpu.assume_multiple %16, 128 : i32
    %18 = arith.index_cast %17 : i32 to index
    %c0 = arith.constant 0 : index
    %19 = vector.load %arg13[%18, %c0] : memref<256x128xbf16, #tpu.memory_space<vmem>>, vector<128x128xbf16>
    %c0_9 = arith.constant 0 : index
    %c0_10 = arith.constant 0 : index
    %20 = vector.load %arg14[%c0_9, %c0_10] : memref<128x128xf32, #tpu.memory_space<vmem>>, vector<128x128xf32>
    %c0_11 = arith.constant 0 : index
    %c0_12 = arith.constant 0 : index
    %21 = vector.load %arg3[%c0_11, %c0_12] : memref<128x128xbf16, #tpu.memory_space<vmem>>, vector<128x128xbf16>
    %cst = arith.constant dense<0.000000e+00> : vector<128x128xf32>
    %22 = tpu.matmul %21, %19, %cst {dimension_numbers = #tpu.dot_dimension_numbers<[1], [0], [0], [1], [0, 0, 1, 1], [], []>} : vector<128x128xbf16>, vector<128x128xbf16>, vector<128x128xf32> -> vector<128x128xf32>
    %23 = arith.addf %20, %22 : vector<128x128xf32>
    %c0_13 = arith.constant 0 : index
    %c0_14 = arith.constant 0 : index
    %24 = vector.load %arg14[%c0_13, %c0_14] : memref<128x128xf32, #tpu.memory_space<vmem>>, vector<128x128xf32>
    tpu.vector_store %arg14[%c0_13, %c0_14], %23 {strides = array<i32>} : memref<128x128xf32, #tpu.memory_space<vmem>>, vector<128x128xf32>,
    %c0_i32_15 = arith.constant 0 : i32
    %25 = arith.cmpi eq, %arg2, %c0_i32_15 : i32
    %26 = arith.extui %25 : i1 to i32
    %c0_i32_16 = arith.constant 0 : i32
    %27 = arith.cmpi ne, %26, %c0_i32_16 : i32
    scf.if %27 {
      %c0_21 = arith.constant 0 : index
      %c0_22 = arith.constant 0 : index
      %c0_23 = arith.constant 0 : index
      %35 = vector.load %arg7[%c0_21, %c0_22, %c0_23] : memref<1x128x128xbf16, #tpu.memory_space<vmem>>, vector<1x128x128xbf16>
      %36 = vector.shape_cast %35 : vector<1x128x128xbf16> to vector<128x128xbf16>
      %37 = arith.index_cast %arg0 : i32 to index
      %c0_24 = arith.constant 0 : index
      %38 = vector.load %arg11[%37, %c0_24] : memref<16x128xf32, #tpu.memory_space<vmem>>, vector<1x128xf32>
      %c0_25 = arith.constant 0 : index
      %c0_26 = arith.constant 0 : index
      %39 = vector.load %arg14[%c0_25, %c0_26] : memref<128x128xf32, #tpu.memory_space<vmem>>, vector<128x128xf32>
      %40 = arith.truncf %39 : vector<128x128xf32> to vector<128x128xbf16>
      %cst_27 = arith.constant dense<0.000000e+00> : vector<128x128xf32>
      %41 = tpu.matmul %40, %36, %cst_27 {dimension_numbers = #tpu.dot_dimension_numbers<[1], [0], [0], [1], [0, 0, 1, 1], [], []>} : vector<128x128xbf16>, vector<128x128xbf16>, vector<128x128xf32> -> vector<128x128xf32>
      %42 = vector.broadcast %38 : vector<1x128xf32> to vector<128x128xf32>
      %43 = arith.addf %41, %42 : vector<128x128xf32>
      %cst_28 = arith.constant 0.000000e+00 : f32
      %44 = vector.broadcast %cst_28 : f32 to vector<128x128xf32>
      %45 = arith.maximumf %43, %44 : vector<128x128xf32>
      %c128_i32_29 = arith.constant 128 : i32
      %46 = arith.muli %arg1, %c128_i32_29 : i32
      %47 = arith.addi %4, %46 : i32
      %48 = tpu.assume_multiple %47, 128 : i32
      %49 = arith.truncf %45 : vector<128x128xf32> to vector<128x128xbf16>
      %50 = arith.index_cast %48 : i32 to index
      %c0_30 = arith.constant 0 : index
      %51 = vector.load %arg13[%50, %c0_30] : memref<256x128xbf16, #tpu.memory_space<vmem>>, vector<128x128xbf16>
      tpu.vector_store %arg13[%50, %c0_30], %49 {strides = array<i32>} : memref<256x128xbf16, #tpu.memory_space<vmem>>, vector<128x128xbf16>,
      %52 = arith.index_cast %arg0 : i32 to index
      %c0_31 = arith.constant 0 : index
      %c0_32 = arith.constant 0 : index
      %53 = vector.load %arg15[%52, %c0_31, %c0_32] : memref<2x8x128xf32, #tpu.memory_space<vmem>>, vector<1x8x128xf32>
      %54 = vector.shape_cast %53 : vector<1x8x128xf32> to vector<8x128xf32>
      %c0_i32_33 = arith.constant 0 : i32
      %c16_i32 = arith.constant 16 : i32
      %55 = arith.addi %c0_i32_33, %c16_i32 : i32
      %c1_i32_34 = arith.constant 1 : i32
      %56 = scf.for %arg16 = %c0_i32_33 to %55 step %c1_i32_34 iter_args(%arg17 = %54) -> (vector<8x128xf32>)  : i32 {
        %c8_i32 = arith.constant 8 : i32
        %61 = arith.muli %arg16, %c8_i32 : i32
        %62 = tpu.assume_multiple %61, 8 : i32
        %63 = arith.addi %48, %62 : i32
        %64 = arith.index_cast %63 : i32 to index
        %c0_38 = arith.constant 0 : index
        %65 = vector.load %arg13[%64, %c0_38] : memref<256x128xbf16, #tpu.memory_space<vmem>>, vector<8x128xbf16>
        %66 = arith.extf %65 : vector<8x128xbf16> to vector<8x128xf32>
        %67 = arith.index_cast %62 : i32 to index
        %c0_39 = arith.constant 0 : index
        %68 = vector.load %arg5[%67, %c0_39] : memref<128x8xbf16, #tpu.memory_space<vmem>>, vector<8x8xbf16>
        %69 = arith.extf %68 : vector<8x8xbf16> to vector<8x8xf32>
        %70 = vector.shape_cast %69 : vector<8x8xf32> to vector<8x8x1xf32>
        %71 = vector.shape_cast %66 : vector<8x128xf32> to vector<8x1x128xf32>
        %72 = vector.broadcast %70 : vector<8x8x1xf32> to vector<8x8x128xf32>
        %73 = vector.broadcast %71 : vector<8x1x128xf32> to vector<8x8x128xf32>
        %74 = arith.mulf %72, %73 : vector<8x8x128xf32>
        %cst_40 = arith.constant dense<0xFF800000> : vector<8x128xf32>
        %75 = vector.multi_reduction <maximumf>, %74, %cst_40 [0] : vector<8x8x128xf32> to vector<8x128xf32>
        %76 = arith.maximumf %arg17, %75 : vector<8x128xf32>
        scf.yield %76 : vector<8x128xf32>
      }
      %c16_i32_35 = arith.constant 16 : i32
      %57 = arith.index_cast %arg0 : i32 to index
      %c0_36 = arith.constant 0 : index
      %c0_37 = arith.constant 0 : index
      %58 = vector.load %arg15[%57, %c0_36, %c0_37] : memref<2x8x128xf32, #tpu.memory_space<vmem>>, vector<1x8x128xf32>
      %59 = vector.shape_cast %58 : vector<1x8x128xf32> to vector<8x128xf32>
      %60 = vector.shape_cast %56 : vector<8x128xf32> to vector<1x8x128xf32>
      tpu.vector_store %arg15[%57, %c0_36, %c0_37], %60 {strides = array<i32>} : memref<2x8x128xf32, #tpu.memory_space<vmem>>, vector<1x8x128xf32>,
    } else {
    }
    %c1_i32_17 = arith.constant 1 : i32
    %28 = arith.cmpi eq, %arg0, %c1_i32_17 : i32
    %c0_i32_18 = arith.constant 0 : i32
    %29 = arith.cmpi eq, %arg1, %c0_i32_18 : i32
    %30 = arith.andi %28, %29 : i1
    %c0_i32_19 = arith.constant 0 : i32
    %31 = arith.cmpi eq, %arg2, %c0_i32_19 : i32
    %32 = arith.andi %30, %31 : i1
    %33 = arith.extui %32 : i1 to i32
    %c0_i32_20 = arith.constant 0 : i32
    %34 = arith.cmpi ne, %33, %c0_i32_20 : i32
    scf.if %34 {
      %cst_21 = arith.constant 0.000000e+00 : f32
      %35 = vector.broadcast %cst_21 : f32 to vector<8x128xf32>
      %c0_22 = arith.constant 0 : index
      %c0_23 = arith.constant 0 : index
      %c0_24 = arith.constant 0 : index
      %36 = vector.load %arg15[%c0_22, %c0_23, %c0_24] : memref<2x8x128xf32, #tpu.memory_space<vmem>>, vector<1x8x128xf32>
      %37 = vector.shape_cast %36 : vector<1x8x128xf32> to vector<8x128xf32>
      %38 = arith.truncf %37 : vector<8x128xf32> to vector<8x128xbf16>
      %c0_25 = arith.constant 0 : index
      %c0_26 = arith.constant 0 : index
      %c0_27 = arith.constant 0 : index
      %39 = vector.load %arg8[%c0_25, %c0_26, %c0_27] : memref<2x128x128xbf16, #tpu.memory_space<vmem>>, vector<1x128x128xbf16>
      %40 = vector.shape_cast %39 : vector<1x128x128xbf16> to vector<128x128xbf16>
      %cst_28 = arith.constant dense<0.000000e+00> : vector<8x128xf32>
      %41 = tpu.matmul %38, %40, %cst_28 {dimension_numbers = #tpu.dot_dimension_numbers<[1], [0], [0], [1], [0, 0, 1, 1], [], []>} : vector<8x128xbf16>, vector<128x128xbf16>, vector<8x128xf32> -> vector<8x128xf32>
      %42 = arith.addf %35, %41 : vector<8x128xf32>
      %c1 = arith.constant 1 : index
      %c0_29 = arith.constant 0 : index
      %c0_30 = arith.constant 0 : index
      %43 = vector.load %arg15[%c1, %c0_29, %c0_30] : memref<2x8x128xf32, #tpu.memory_space<vmem>>, vector<1x8x128xf32>
      %44 = vector.shape_cast %43 : vector<1x8x128xf32> to vector<8x128xf32>
      %45 = arith.truncf %44 : vector<8x128xf32> to vector<8x128xbf16>
      %c1_31 = arith.constant 1 : index
      %c0_32 = arith.constant 0 : index
      %c0_33 = arith.constant 0 : index
      %46 = vector.load %arg8[%c1_31, %c0_32, %c0_33] : memref<2x128x128xbf16, #tpu.memory_space<vmem>>, vector<1x128x128xbf16>
      %47 = vector.shape_cast %46 : vector<1x128x128xbf16> to vector<128x128xbf16>
      %cst_34 = arith.constant dense<0.000000e+00> : vector<8x128xf32>
      %48 = tpu.matmul %45, %47, %cst_34 {dimension_numbers = #tpu.dot_dimension_numbers<[1], [0], [0], [1], [0, 0, 1, 1], [], []>} : vector<8x128xbf16>, vector<128x128xbf16>, vector<8x128xf32> -> vector<8x128xf32>
      %49 = arith.addf %42, %48 : vector<8x128xf32>
      %c2 = arith.constant 2 : index
      %c0_35 = arith.constant 0 : index
      %50 = vector.load %arg11[%c2, %c0_35] : memref<16x128xf32, #tpu.memory_space<vmem>>, vector<1x128xf32>
      %51 = vector.broadcast %50 : vector<1x128xf32> to vector<8x128xf32>
      %52 = arith.addf %49, %51 : vector<8x128xf32>
      %c3 = arith.constant 3 : index
      %c0_36 = arith.constant 0 : index
      %53 = vector.load %arg11[%c3, %c0_36] : memref<16x128xf32, #tpu.memory_space<vmem>>, vector<1x128xf32>
      %c4 = arith.constant 4 : index
      %c0_37 = arith.constant 0 : index
      %54 = vector.load %arg11[%c4, %c0_37] : memref<16x128xf32, #tpu.memory_space<vmem>>, vector<1x128xf32>
      %c5 = arith.constant 5 : index
      %c0_38 = arith.constant 0 : index
      %55 = vector.load %arg11[%c5, %c0_38] : memref<16x128xf32, #tpu.memory_space<vmem>>, vector<1x128xf32>
      %56 = vector.broadcast %55 : vector<1x128xf32> to vector<8x128xf32>
      %57 = arith.mulf %52, %56 : vector<8x128xf32>
      %cst_39 = arith.constant dense<0.000000e+00> : vector<8xf32>
      %58 = vector.multi_reduction <add>, %57, %cst_39 [1] : vector<8x128xf32> to vector<8xf32>
      %59 = vector.shape_cast %58 : vector<8xf32> to vector<8x1xf32>
      %cst_40 = arith.constant 6.250000e-02 : f32
      %60 = vector.broadcast %cst_40 : f32 to vector<8x1xf32>
      %61 = arith.mulf %59, %60 : vector<8x1xf32>
      %62 = vector.broadcast %61 : vector<8x1xf32> to vector<8x128xf32>
      %63 = arith.subf %52, %62 : vector<8x128xf32>
      %64 = vector.broadcast %55 : vector<1x128xf32> to vector<8x128xf32>
      %65 = arith.mulf %63, %64 : vector<8x128xf32>
      %66 = arith.mulf %65, %65 : vector<8x128xf32>
      %cst_41 = arith.constant dense<0.000000e+00> : vector<8xf32>
      %67 = vector.multi_reduction <add>, %66, %cst_41 [1] : vector<8x128xf32> to vector<8xf32>
      %68 = vector.shape_cast %67 : vector<8xf32> to vector<8x1xf32>
      %cst_42 = arith.constant 6.250000e-02 : f32
      %69 = vector.broadcast %cst_42 : f32 to vector<8x1xf32>
      %70 = arith.mulf %68, %69 : vector<8x1xf32>
      %cst_43 = arith.constant 9.99999974E-6 : f32
      %71 = vector.broadcast %cst_43 : f32 to vector<8x1xf32>
      %72 = arith.addf %70, %71 : vector<8x1xf32>
      %73 = math.rsqrt %72 : vector<8x1xf32>
      %74 = vector.broadcast %73 : vector<8x1xf32> to vector<8x128xf32>
      %75 = arith.mulf %65, %74 : vector<8x128xf32>
      %76 = vector.broadcast %53 : vector<1x128xf32> to vector<8x128xf32>
      %77 = arith.mulf %75, %76 : vector<8x128xf32>
      %78 = vector.broadcast %54 : vector<1x128xf32> to vector<8x128xf32>
      %79 = arith.addf %77, %78 : vector<8x128xf32>
      %cst_44 = arith.constant 0.000000e+00 : f32
      %80 = vector.broadcast %cst_44 : f32 to vector<8x128xf32>
      %81 = arith.maximumf %79, %80 : vector<8x128xf32>
      %c0_45 = arith.constant 0 : index
      %c0_46 = arith.constant 0 : index
      %82 = vector.load %arg6[%c0_45, %c0_46] : memref<8x128xf32, #tpu.memory_space<vmem>>, vector<8x128xf32>
      %83 = arith.truncf %82 : vector<8x128xf32> to vector<8x128xbf16>
      %c0_47 = arith.constant 0 : index
      %c0_48 = arith.constant 0 : index
      %84 = vector.load %arg9[%c0_47, %c0_48] : memref<128x128xbf16, #tpu.memory_space<vmem>>, vector<128x128xbf16>
      %cst_49 = arith.constant dense<0.000000e+00> : vector<8x128xf32>
      %85 = tpu.matmul %83, %84, %cst_49 {dimension_numbers = #tpu.dot_dimension_numbers<[1], [0], [0], [1], [0, 0, 1, 1], [], []>} : vector<8x128xbf16>, vector<128x128xbf16>, vector<8x128xf32> -> vector<8x128xf32>
      %c6 = arith.constant 6 : index
      %c0_50 = arith.constant 0 : index
      %86 = vector.load %arg11[%c6, %c0_50] : memref<16x128xf32, #tpu.memory_space<vmem>>, vector<1x128xf32>
      %87 = vector.broadcast %86 : vector<1x128xf32> to vector<8x128xf32>
      %88 = arith.addf %85, %87 : vector<8x128xf32>
      %c7 = arith.constant 7 : index
      %c0_51 = arith.constant 0 : index
      %89 = vector.load %arg11[%c7, %c0_51] : memref<16x128xf32, #tpu.memory_space<vmem>>, vector<1x128xf32>
      %c8 = arith.constant 8 : index
      %c0_52 = arith.constant 0 : index
      %90 = vector.load %arg11[%c8, %c0_52] : memref<16x128xf32, #tpu.memory_space<vmem>>, vector<1x128xf32>
      %c9 = arith.constant 9 : index
      %c0_53 = arith.constant 0 : index
      %91 = vector.load %arg11[%c9, %c0_53] : memref<16x128xf32, #tpu.memory_space<vmem>>, vector<1x128xf32>
      %92 = vector.broadcast %91 : vector<1x128xf32> to vector<8x128xf32>
      %93 = arith.mulf %88, %92 : vector<8x128xf32>
      %cst_54 = arith.constant dense<0.000000e+00> : vector<8xf32>
      %94 = vector.multi_reduction <add>, %93, %cst_54 [1] : vector<8x128xf32> to vector<8xf32>
      %95 = vector.shape_cast %94 : vector<8xf32> to vector<8x1xf32>
      %cst_55 = arith.constant 1.250000e-01 : f32
      %96 = vector.broadcast %cst_55 : f32 to vector<8x1xf32>
      %97 = arith.mulf %95, %96 : vector<8x1xf32>
      %98 = vector.broadcast %97 : vector<8x1xf32> to vector<8x128xf32>
      %99 = arith.subf %88, %98 : vector<8x128xf32>
      %100 = vector.broadcast %91 : vector<1x128xf32> to vector<8x128xf32>
      %101 = arith.mulf %99, %100 : vector<8x128xf32>
      %102 = arith.mulf %101, %101 : vector<8x128xf32>
      %cst_56 = arith.constant dense<0.000000e+00> : vector<8xf32>
      %103 = vector.multi_reduction <add>, %102, %cst_56 [1] : vector<8x128xf32> to vector<8xf32>
      %104 = vector.shape_cast %103 : vector<8xf32> to vector<8x1xf32>
      %cst_57 = arith.constant 1.250000e-01 : f32
      %105 = vector.broadcast %cst_57 : f32 to vector<8x1xf32>
      %106 = arith.mulf %104, %105 : vector<8x1xf32>
      %cst_58 = arith.constant 9.99999974E-6 : f32
      %107 = vector.broadcast %cst_58 : f32 to vector<8x1xf32>
      %108 = arith.addf %106, %107 : vector<8x1xf32>
      %109 = math.rsqrt %108 : vector<8x1xf32>
      %110 = vector.broadcast %109 : vector<8x1xf32> to vector<8x128xf32>
      %111 = arith.mulf %101, %110 : vector<8x128xf32>
      %112 = vector.broadcast %89 : vector<1x128xf32> to vector<8x128xf32>
      %113 = arith.mulf %111, %112 : vector<8x128xf32>
      %114 = vector.broadcast %90 : vector<1x128xf32> to vector<8x128xf32>
      %115 = arith.addf %113, %114 : vector<8x128xf32>
      %cst_59 = arith.constant 0.000000e+00 : f32
      %116 = vector.broadcast %cst_59 : f32 to vector<8x128xf32>
      %117 = arith.maximumf %115, %116 : vector<8x128xf32>
      %118 = tpu.concatenate %81, %117 in 1 : vector<8x128xf32>, vector<8x128xf32> -> vector<8x256xf32>
      %119 = arith.truncf %118 : vector<8x256xf32> to vector<8x256xbf16>
      %c0_60 = arith.constant 0 : index
      %c0_61 = arith.constant 0 : index
      %120 = vector.load %arg10[%c0_60, %c0_61] : memref<256x128xbf16, #tpu.memory_space<vmem>>, vector<256x128xbf16>
      %cst_62 = arith.constant dense<0.000000e+00> : vector<8x128xf32>
      %121 = tpu.matmul %119, %120, %cst_62 {dimension_numbers = #tpu.dot_dimension_numbers<[1], [0], [0], [1], [0, 0, 1, 1], [], []>} : vector<8x256xbf16>, vector<256x128xbf16>, vector<8x128xf32> -> vector<8x128xf32>
      %c10 = arith.constant 10 : index
      %c0_63 = arith.constant 0 : index
      %122 = vector.load %arg11[%c10, %c0_63] : memref<16x128xf32, #tpu.memory_space<vmem>>, vector<1x128xf32>
      %123 = vector.broadcast %122 : vector<1x128xf32> to vector<8x128xf32>
      %124 = arith.addf %121, %123 : vector<8x128xf32>
      %c11 = arith.constant 11 : index
      %c0_64 = arith.constant 0 : index
      %125 = vector.load %arg11[%c11, %c0_64] : memref<16x128xf32, #tpu.memory_space<vmem>>, vector<1x128xf32>
      %c12 = arith.constant 12 : index
      %c0_65 = arith.constant 0 : index
      %126 = vector.load %arg11[%c12, %c0_65] : memref<16x128xf32, #tpu.memory_space<vmem>>, vector<1x128xf32>
      %c13 = arith.constant 13 : index
      %c0_66 = arith.constant 0 : index
      %127 = vector.load %arg11[%c13, %c0_66] : memref<16x128xf32, #tpu.memory_space<vmem>>, vector<1x128xf32>
      %128 = vector.broadcast %127 : vector<1x128xf32> to vector<8x128xf32>
      %129 = arith.mulf %124, %128 : vector<8x128xf32>
      %cst_67 = arith.constant dense<0.000000e+00> : vector<8xf32>
      %130 = vector.multi_reduction <add>, %129, %cst_67 [1] : vector<8x128xf32> to vector<8xf32>
      %131 = vector.shape_cast %130 : vector<8xf32> to vector<8x1xf32>
      %cst_68 = arith.constant 0.333333343 : f32
      %132 = vector.broadcast %cst_68 : f32 to vector<8x1xf32>
      %133 = arith.mulf %131, %132 : vector<8x1xf32>
      %134 = vector.broadcast %133 : vector<8x1xf32> to vector<8x128xf32>
      %135 = arith.subf %124, %134 : vector<8x128xf32>
      %136 = vector.broadcast %127 : vector<1x128xf32> to vector<8x128xf32>
      %137 = arith.mulf %135, %136 : vector<8x128xf32>
      %138 = arith.mulf %137, %137 : vector<8x128xf32>
      %cst_69 = arith.constant dense<0.000000e+00> : vector<8xf32>
      %139 = vector.multi_reduction <add>, %138, %cst_69 [1] : vector<8x128xf32> to vector<8xf32>
      %140 = vector.shape_cast %139 : vector<8xf32> to vector<8x1xf32>
      %cst_70 = arith.constant 0.333333343 : f32
      %141 = vector.broadcast %cst_70 : f32 to vector<8x1xf32>
      %142 = arith.mulf %140, %141 : vector<8x1xf32>
      %cst_71 = arith.constant 9.99999974E-6 : f32
      %143 = vector.broadcast %cst_71 : f32 to vector<8x1xf32>
      %144 = arith.addf %142, %143 : vector<8x1xf32>
      %145 = math.rsqrt %144 : vector<8x1xf32>
      %146 = vector.broadcast %145 : vector<8x1xf32> to vector<8x128xf32>
      %147 = arith.mulf %137, %146 : vector<8x128xf32>
      %148 = vector.broadcast %125 : vector<1x128xf32> to vector<8x128xf32>
      %149 = arith.mulf %147, %148 : vector<8x128xf32>
      %150 = vector.broadcast %126 : vector<1x128xf32> to vector<8x128xf32>
      %151 = arith.addf %149, %150 : vector<8x128xf32>
      %c0_72 = arith.constant 0 : index
      %c0_73 = arith.constant 0 : index
      %152 = vector.load %arg12[%c0_72, %c0_73] : memref<8x128xf32, #tpu.memory_space<vmem>>, vector<8x128xf32>
      tpu.vector_store %arg12[%c0_72, %c0_73], %151 {strides = array<i32>} : memref<8x128xf32, #tpu.memory_space<vmem>>, vector<8x128xf32>,
    } else {
    }
    return
  }
  func.func @transform_0(%arg0: i32, %arg1: i32, %arg2: i32) -> (i32, i32) {
    %c0_i32 = arith.constant 0 : i32
    return %arg1, %arg2 : i32, i32
  }
  func.func @transform_1(%arg0: i32, %arg1: i32, %arg2: i32) -> (i32, i32) {
    %c0_i32 = arith.constant 0 : i32
    %c0_i32_0 = arith.constant 0 : i32
    %c0_i32_1 = arith.constant 0 : i32
    return %c0_i32, %c0_i32_0 : i32, i32
  }
  func.func @transform_2(%arg0: i32, %arg1: i32, %arg2: i32) -> (i32, i32) {
    %c0_i32 = arith.constant 0 : i32
    %c0_i32_0 = arith.constant 0 : i32
    return %arg1, %c0_i32 : i32, i32
  }
  func.func @transform_3(%arg0: i32, %arg1: i32, %arg2: i32) -> (i32, i32) {
    %c0_i32 = arith.constant 0 : i32
    %c0_i32_0 = arith.constant 0 : i32
    %c0_i32_1 = arith.constant 0 : i32
    return %c0_i32, %c0_i32_0 : i32, i32
  }
  func.func @transform_4(%arg0: i32, %arg1: i32, %arg2: i32) -> (i32, i32, i32) {
    %c0_i32 = arith.constant 0 : i32
    %c0_i32_0 = arith.constant 0 : i32
    %c0_i32_1 = arith.constant 0 : i32
    return %arg0, %c0_i32, %c0_i32_0 : i32, i32, i32
  }
  func.func @transform_5(%arg0: i32, %arg1: i32, %arg2: i32) -> (i32, i32, i32) {
    %c0_i32 = arith.constant 0 : i32
    %c0_i32_0 = arith.constant 0 : i32
    %c0_i32_1 = arith.constant 0 : i32
    %c0_i32_2 = arith.constant 0 : i32
    return %c0_i32, %c0_i32_0, %c0_i32_1 : i32, i32, i32
  }
  func.func @transform_6(%arg0: i32, %arg1: i32, %arg2: i32) -> (i32, i32) {
    %c0_i32 = arith.constant 0 : i32
    %c0_i32_0 = arith.constant 0 : i32
    %c0_i32_1 = arith.constant 0 : i32
    return %c0_i32, %c0_i32_0 : i32, i32
  }
  func.func @transform_7(%arg0: i32, %arg1: i32, %arg2: i32) -> (i32, i32) {
    %c0_i32 = arith.constant 0 : i32
    %c0_i32_0 = arith.constant 0 : i32
    %c0_i32_1 = arith.constant 0 : i32
    return %c0_i32, %c0_i32_0 : i32, i32
  }
  func.func @transform_8(%arg0: i32, %arg1: i32, %arg2: i32) -> (i32, i32) {
    %c0_i32 = arith.constant 0 : i32
    %c0_i32_0 = arith.constant 0 : i32
    %c0_i32_1 = arith.constant 0 : i32
    return %c0_i32, %c0_i32_0 : i32, i32
  }
  func.func @transform_9(%arg0: i32, %arg1: i32, %arg2: i32) -> (i32, i32) {
    %c0_i32 = arith.constant 0 : i32
    %c0_i32_0 = arith.constant 0 : i32
    %c0_i32_1 = arith.constant 0 : i32
    return %c0_i32, %c0_i32_0 : i32, i32
  }
}

</mosaic_0001>

<llo_original>
// kernel: tpu_custom_call.1
$region0: #{tpu_custom_call.1}
  #allocation0 [shape = 'u32[]', space=smem, size = 0x4, offset = 0x4, fixed_abs, tag = 'smem constant byte address 0x4 - core index']
  #allocation1 [shape = 'u32[144,128]{1,0:T(1,128)}', space=vmem, size = 0x12000, scoped, tag = 'internal scratch']
  #allocation2 [shape = 'bf16[256,128]{1,0:T(8,128)(2,1)}', space=vmem, size = 0x10000, scoped, tag = 'scratch operand']
  #allocation3 [shape = 'f32[128,128]{1,0:T(8,128)}', space=vmem, size = 0x10000, scoped, tag = 'scratch operand']
  #allocation4 [shape = 'f32[2,8,128]{2,1,0:T(8,128)}', space=vmem, size = 0x2000, scoped, tag = 'scratch operand']
  %s0 = inlined_call_operand.vmem [shape: bf16[128,128], index: 0, kind: input, shape index: {}]
  %s1 = inlined_call_operand.hbm [shape: bf16[128,128], index: 1, kind: input, shape index: {}]
  %s2 = inlined_call_operand.vmem [shape: bf16[128,8], index: 2, kind: input, shape index: {}]
  %s3 = inlined_call_operand.hbm [shape: f32[8,128], index: 3, kind: input, shape index: {}]
  %s4 = inlined_call_operand.hbm [shape: bf16[2,128,128], index: 4, kind: input, shape index: {}]
  %s5 = inlined_call_operand.hbm [shape: bf16[2,128,128], index: 5, kind: input, shape index: {}]
  %s6 = inlined_call_operand.hbm [shape: bf16[128,128], index: 6, kind: input, shape index: {}]
  %s7 = inlined_call_operand.hbm [shape: bf16[256,128], index: 7, kind: input, shape index: {}]
  %s8 = inlined_call_operand.vmem [shape: f32[16,128], index: 8, kind: input, shape index: {}]
  %s9 = inlined_call_operand.hbm [shape: f32[8,128], index: 9, kind: output, shape index: {}]
  %s10 = sld [smem:[#allocation0]]
  $region116: #{tpu_custom_call.1} parent=0
    _
  %s12 = ssub.s32 1, %s10
  %s13 = scalar_select 0, %s12, %s10
  $region1: #{tpu_custom_call.1} parent=0
    #allocation5 [shape = 'u8[32768]{0}', space=vmem, size = 0x8000, scoped, tag = 'input window, operand 1, single buffered']
    #allocation6 [shape = 's32[2]{0}', space=sflag, size = 0x8, scoped, tag = 'scoped memory for tpu_custom_call.1']
    #allocation7 [shape = 's32[2]{0}', space=sflag, size = 0x8, scoped, tag = 'scoped memory for tpu_custom_call.1']
    #allocation8 [shape = 'u8[4096]{0}', space=vmem, size = 0x1000, scoped, tag = 'input window, operand 3, single buffered']
    #allocation9 [shape = 's32[1]{0}', space=sflag, size = 0x4, scoped, tag = 'scoped memory for tpu_custom_call.1']
    #allocation10 [shape = 'u8[65536]{0}', space=vmem, size = 0x10000, scoped, tag = 'input window, operand 4']
    #allocation11 [shape = 'u8[65536]{0}', space=vmem, size = 0x10000, scoped, tag = 'input window, operand 5, single buffered']
    #allocation12 [shape = 'u8[32768]{0}', space=vmem, size = 0x8000, scoped, tag = 'input window, operand 6, single buffered']
    #allocation13 [shape = 's32[1]{0}', space=sflag, size = 0x4, scoped, tag = 'scoped memory for tpu_custom_call.1']
    #allocation14 [shape = 'u8[65536]{0}', space=vmem, size = 0x10000, scoped, tag = 'input window, operand 7, single buffered']
    #allocation15 [shape = 'u8[4096]{0}', space=vmem, size = 0x1000, scoped, tag = 'output window, operand 0, single buffered']
    %14 = vsyncpa [#allocation6], 0
    %15 = vsyncpa [#allocation9], 0
    %16 = vsyncpa [#allocation13], 0
    %17 = vsyncpa [#allocation7], 0
    loop: start=0, step=1, limit=4
    $region2: #{tpu_custom_call.1} parent=1 // loop_pre_header
      _
    $region3: #{tpu_custom_call.1} parent=1 // loop_header
      %s19 = sphi 0, %s23
      %p20 = scmp.ge.s32.totalorder %s19, 4
      %s26 = sphi 0, %s45
      %s27 = sphi 0, %s41
      %s28 = sphi 0, %s37
      %s29 = sphi 0, %s26
      %s30 = sphi 0, %s27
      %s31 = sphi 0, %s28
      %s32 = sphi 0, %s29
      %s33 = sphi 0, %s30
      %s34 = sphi 0, %s31
      %s50 = sphi 0, %s52
      %s53 = sphi 0, %s50
      %s54 = sphi 0, %s53
      %s70 = sphi 0, %s54
      %s74 = sphi 0, %s74
      %s76 = sphi 0, %s74
      %s77 = sphi 0, %s76
      %s91 = sphi 0, %s77
      %s97 = sphi 0, %s99
      %s100 = sphi 0, %s97
      %s101 = sphi 0, %s100
      %s117 = sphi 0, %s101
      %s121 = sphi 0, %s121
      %s123 = sphi 0, %s121
      %s124 = sphi 0, %s123
      %s138 = sphi 0, %s124
      %s144 = sphi 0, %s146
      %s147 = sphi 0, %s144
      %s148 = sphi 0, %s147
      %s164 = sphi 0, %s148
      %s168 = sphi 0, %s168
      %s170 = sphi 0, %s168
      %s171 = sphi 0, %s170
      %s185 = sphi 0, %s171
      %s189 = sphi 0, %s189
      %s191 = sphi 0, %s189
      %s192 = sphi 0, %s191
      %s206 = sphi 0, %s192
      %s210 = sphi 0, %s210
      %s212 = sphi 0, %s210
      %s213 = sphi 0, %s212
      %s227 = sphi 0, %s213
      %s231 = sphi 0, %s231
      %s233 = sphi 0, %s231
      %s234 = sphi 0, %s233
      %s248 = sphi 0, %s234
      %s252 = sphi 0, %s252
      %s254 = sphi 0, %s252
      %s255 = sphi 0, %s254
      %s269 = sphi 0, %s255
    $region4: #{tpu_custom_call.1} parent=1 // loop_header_branch
      %22 = sbr.rel (%p20) target = $region8
    $region5: #{tpu_custom_call.1} parent=1 // loop_body
      %s24 = ssub.s32 %s19, 1
      %s25 = ssub.s32 %s19, 2
      %s35 = sadd.s32 1, %s28
      %p36 = scmp.ge.s32.totalorder %s35, 1
      %s37 = scalar_select %p36, 0, %s35
      %s38 = sadd.s32 1, %s27
      %s39 = scalar_select %p36, %s38, %s27
      %p40 = scmp.ge.s32.totalorder %s39, 1
      %s41 = scalar_select %p40, 0, %s39
      %s42 = sadd.s32 1, %s26
      %s43 = scalar_select %p40, %s42, %s26
      %p44 = scmp.ge.s32.totalorder %s43, 2
      %s45 = scalar_select %p44, 0, %s43
      %s46 = ssub.s32 %s27, %s41
      %s47 = ssub.s32 %s28, %s37
      %s48 = sor.u32 %s46, %s47
      %p49 = scmp.eq.s32.totalorder %s48, 0
      %s51 = sadd.s32 %s50, 1
      %s52 = scalar_select %p49, %s50, %s51
      %p55 = pneg %p49
      %p56 = scmp.eq.s32.totalorder %s19, 1
      %p57 = por %p55, %p56
      %p58 = scmp.ne.s32.totalorder %s50, %s53
      %p59 = scmp.eq.s32.totalorder %s19, 0
      %p60 = por %p58, %p59
      %p61 = scmp.ne.s32.totalorder %s50, %s53
      %p62 = scmp.eq.s32.totalorder %s24, 1
      %p63 = por %p61, %p62
      %p64 = scmp.ne.s32.totalorder %s53, %s54
      %p65 = scmp.eq.s32.totalorder %s24, 0
      %p66 = por %p64, %p65
      %p67 = scmp.ne.s32.totalorder %s53, %s54
      %p68 = scmp.eq.s32.totalorder %s25, 1
      %p69 = por %p67, %p68
      %p71 = scmp.ne.s32.totalorder %s54, %s70
      %p72 = scmp.eq.s32.totalorder %s25, 0
      %p73 = por %p71, %p72
      %s75 = sadd.s32 %s74, 1
      %p78 = scmp.eq.s32.totalorder %s19, 1
      %p79 = scmp.ne.s32.totalorder %s74, %s76
      %p80 = scmp.eq.s32.totalorder %s19, 0
      %p81 = por %p79, %p80
      %p82 = scmp.ne.s32.totalorder %s74, %s76
      %p83 = scmp.eq.s32.totalorder %s24, 1
      %p84 = por %p82, %p83
      %p85 = scmp.ne.s32.totalorder %s76, %s77
      %p86 = scmp.eq.s32.totalorder %s24, 0
      %p87 = por %p85, %p86
      %p88 = scmp.ne.s32.totalorder %s76, %s77
      %p89 = scmp.eq.s32.totalorder %s25, 1
      %p90 = por %p88, %p89
      %p92 = scmp.ne.s32.totalorder %s77, %s91
      %p93 = scmp.eq.s32.totalorder %s25, 0
      %p94 = por %p92, %p93
      %s95 = ssub.s32 %s27, %s41
      %p96 = scmp.eq.s32.totalorder %s95, 0
      %s98 = sadd.s32 %s97, 1
      %s99 = scalar_select %p96, %s97, %s98
      %p102 = pneg %p96
      %p103 = scmp.eq.s32.totalorder %s19, 1
      %p104 = por %p102, %p103
      %p105 = scmp.ne.s32.totalorder %s97, %s100
      %p106 = scmp.eq.s32.totalorder %s19, 0
      %p107 = por %p105, %p106
      %p108 = scmp.ne.s32.totalorder %s97, %s100
      %p109 = scmp.eq.s32.totalorder %s24, 1
      %p110 = por %p108, %p109
      %p111 = scmp.ne.s32.totalorder %s100, %s101
      %p112 = scmp.eq.s32.totalorder %s24, 0
      %p113 = por %p111, %p112
      %p114 = scmp.ne.s32.totalorder %s100, %s101
      %p115 = scmp.eq.s32.totalorder %s25, 1
      %p116 = por %p114, %p115
      %p118 = scmp.ne.s32.totalorder %s101, %s117
      %p119 = scmp.eq.s32.totalorder %s25, 0
      %p120 = por %p118, %p119
      %s122 = sadd.s32 %s121, 1
      %p125 = scmp.eq.s32.totalorder %s19, 1
      %p126 = scmp.ne.s32.totalorder %s121, %s123
      %p127 = scmp.eq.s32.totalorder %s19, 0
      %p128 = por %p126, %p127
      %p129 = scmp.ne.s32.totalorder %s121, %s123
      %p130 = scmp.eq.s32.totalorder %s24, 1
      %p131 = por %p129, %p130
      %p132 = scmp.ne.s32.totalorder %s123, %s124
      %p133 = scmp.eq.s32.totalorder %s24, 0
      %p134 = por %p132, %p133
      %p135 = scmp.ne.s32.totalorder %s123, %s124
      %p136 = scmp.eq.s32.totalorder %s25, 1
      %p137 = por %p135, %p136
      %p139 = scmp.ne.s32.totalorder %s124, %s138
      %p140 = scmp.eq.s32.totalorder %s25, 0
      %p141 = por %p139, %p140
      %s142 = ssub.s32 %s26, %s45
      %p143 = scmp.eq.s32.totalorder %s142, 0
      %s145 = sadd.s32 %s144, 1
      %s146 = scalar_select %p143, %s144, %s145
      %p149 = pneg %p143
      %p150 = scmp.eq.s32.totalorder %s19, 1
      %p151 = por %p149, %p150
      %p152 = scmp.ne.s32.totalorder %s144, %s147
      %p153 = scmp.eq.s32.totalorder %s19, 0
      %p154 = por %p152, %p153
      %p155 = scmp.ne.s32.totalorder %s144, %s147
      %p156 = scmp.eq.s32.totalorder %s24, 1
      %p157 = por %p155, %p156
      %p158 = scmp.ne.s32.totalorder %s147, %s148
      %p159 = scmp.eq.s32.totalorder %s24, 0
      %p160 = por %p158, %p159
      %p161 = scmp.ne.s32.totalorder %s147, %s148
      %p162 = scmp.eq.s32.totalorder %s25, 1
      %p163 = por %p161, %p162
      %p165 = scmp.ne.s32.totalorder %s148, %s164
      %p166 = scmp.eq.s32.totalorder %s25, 0
      %p167 = por %p165, %p166
      %s169 = sadd.s32 %s168, 1
      %p172 = scmp.eq.s32.totalorder %s19, 1
      %p173 = scmp.ne.s32.totalorder %s168, %s170
      %p174 = scmp.eq.s32.totalorder %s19, 0
      %p175 = por %p173, %p174
      %p176 = scmp.ne.s32.totalorder %s168, %s170
      %p177 = scmp.eq.s32.totalorder %s24, 1
      %p178 = por %p176, %p177
      %p179 = scmp.ne.s32.totalorder %s170, %s171
      %p180 = scmp.eq.s32.totalorder %s24, 0
      %p181 = por %p179, %p180
      %p182 = scmp.ne.s32.totalorder %s170, %s171
      %p183 = scmp.eq.s32.totalorder %s25, 1
      %p184 = por %p182, %p183
      %p186 = scmp.ne.s32.totalorder %s171, %s185
      %p187 = scmp.eq.s32.totalorder %s25, 0
      %p188 = por %p186, %p187
      %s190 = sadd.s32 %s189, 1
      %p193 = scmp.eq.s32.totalorder %s19, 1
      %p194 = scmp.ne.s32.totalorder %s189, %s191
      %p195 = scmp.eq.s32.totalorder %s19, 0
      %p196 = por %p194, %p195
      %p197 = scmp.ne.s32.totalorder %s189, %s191
      %p198 = scmp.eq.s32.totalorder %s24, 1
      %p199 = por %p197, %p198
      %p200 = scmp.ne.s32.totalorder %s191, %s192
      %p201 = scmp.eq.s32.totalorder %s24, 0
      %p202 = por %p200, %p201
      %p203 = scmp.ne.s32.totalorder %s191, %s192
      %p204 = scmp.eq.s32.totalorder %s25, 1
      %p205 = por %p203, %p204
      %p207 = scmp.ne.s32.totalorder %s192, %s206
      %p208 = scmp.eq.s32.totalorder %s25, 0
      %p209 = por %p207, %p208
      %s211 = sadd.s32 %s210, 1
      %p214 = scmp.eq.s32.totalorder %s19, 1
      %p215 = scmp.ne.s32.totalorder %s210, %s212
      %p216 = scmp.eq.s32.totalorder %s19, 0
      %p217 = por %p215, %p216
      %p218 = scmp.ne.s32.totalorder %s210, %s212
      %p219 = scmp.eq.s32.totalorder %s24, 1
      %p220 = por %p218, %p219
      %p221 = scmp.ne.s32.totalorder %s212, %s213
      %p222 = scmp.eq.s32.totalorder %s24, 0
      %p223 = por %p221, %p222
      %p224 = scmp.ne.s32.totalorder %s212, %s213
      %p225 = scmp.eq.s32.totalorder %s25, 1
      %p226 = por %p224, %p225
      %p228 = scmp.ne.s32.totalorder %s213, %s227
      %p229 = scmp.eq.s32.totalorder %s25, 0
      %p230 = por %p228, %p229
      %s232 = sadd.s32 %s231, 1
      %p235 = scmp.eq.s32.totalorder %s19, 1
      %p236 = scmp.ne.s32.totalorder %s231, %s233
      %p237 = scmp.eq.s32.totalorder %s19, 0
      %p238 = por %p236, %p237
      %p239 = scmp.ne.s32.totalorder %s231, %s233
      %p240 = scmp.eq.s32.totalorder %s24, 1
      %p241 = por %p239, %p240
      %p242 = scmp.ne.s32.totalorder %s233, %s234
      %p243 = scmp.eq.s32.totalorder %s24, 0
      %p244 = por %p242, %p243
      %p245 = scmp.ne.s32.totalorder %s233, %s234
      %p246 = scmp.eq.s32.totalorder %s25, 1
      %p247 = por %p245, %p246
      %p249 = scmp.ne.s32.totalorder %s234, %s248
      %p250 = scmp.eq.s32.totalorder %s25, 0
      %p251 = por %p249, %p250
      %s253 = sadd.s32 %s252, 1
      %p256 = scmp.eq.s32.totalorder %s19, 1
      %p257 = scmp.ne.s32.totalorder %s252, %s254
      %p258 = scmp.eq.s32.totalorder %s19, 0
      %p259 = por %p257, %p258
      %p260 = scmp.ne.s32.totalorder %s252, %s254
      %p261 = scmp.eq.s32.totalorder %s24, 1
      %p262 = por %p260, %p261
      %p263 = scmp.ne.s32.totalorder %s254, %s255
      %p264 = scmp.eq.s32.totalorder %s24, 0
      %p265 = por %p263, %p264
      %p266 = scmp.ne.s32.totalorder %s254, %s255
      %p267 = scmp.eq.s32.totalorder %s25, 1
      %p268 = por %p266, %p267
      %p270 = scmp.ne.s32.totalorder %s255, %s269
      %p271 = scmp.eq.s32.totalorder %s25, 0
      %p272 = por %p270, %p271
      %p273 = scmp.le.s32.totalorder 1, %s19
      %p274 = scmp.lt.s32.totalorder %s19, 3
      %p275 = pnand %p273, %p274
      %p276 = pneg %p275
      // Predicated region
      $region9: #{tpu_custom_call.1} parent=5 // pred_check
        _
      $region10: #{tpu_custom_call.1} parent=5 // pred_check_branch
        %278 = sbr.rel (%p275) target = $region12
      $region11: #{tpu_custom_call.1} parent=5 // pred_region
        %s279 = ssub.s32 %s19, 1
        // Predicated region
        $region13: #{tpu_custom_call.1} parent=11 // pred_check
          %p280 = pneg %p66
        $region14: #{tpu_custom_call.1} parent=11 // pred_check_branch
          %282 = sbr.rel (%p280) target = $region16
        $region15: #{tpu_custom_call.1} parent=11 // pred_region
          %s283 = smul.u32 16, %s30
          %p284 = scmp.lt.s32.totalorder %s283, 15
          %s285 = scalar_select %p284, %s283, 15
          %p286 = scmp.lt.s32.totalorder %s31, 0
          %s287 = scalar_select %p286, %s31, 0
          %s288 = sadd.s32 %s287, %s285
          %s289 = smul.addr %s288, 4
          %s290 = scalar_lea.vmem %s0, %s289
          %s291 = smul.u32 16, %s30
        $region16: #{tpu_custom_call.1} parent=11 // pred_fallthru
          _
        // Predicated region
        $region17: #{tpu_custom_call.1} parent=11 // pred_check
          %p292 = pneg %p87
        $region18: #{tpu_custom_call.1} parent=11 // pred_check_branch
          %294 = sbr.rel (%p292) target = $region20
        $region19: #{tpu_custom_call.1} parent=11 // pred_region
          %s296 = ssub.s32 1024, 1024
          %297 = vsyncadd [#allocation6], %s296
          %s298 = sshll.u32 [#allocation5], 4
          %s299 = int_to_ptr.vmem [resolvable:$true] %s298
          %304 = dma.hbm_to_vmem [thread:$0]  %s1, 1024, %s299, [#allocation6], 64, 64, 4
        $region20: #{tpu_custom_call.1} parent=11 // pred_fallthru
          _
        // Predicated region
        $region21: #{tpu_custom_call.1} parent=11 // pred_check
          %p305 = pneg %p113
        $region22: #{tpu_custom_call.1} parent=11 // pred_check_branch
          %307 = sbr.rel (%p305) target = $region24
        $region23: #{tpu_custom_call.1} parent=11 // pred_region
          %s308 = smul.u32 16, %s30
          %p309 = scmp.lt.s32.totalorder %s308, 15
          %s310 = scalar_select %p309, %s308, 15
          %s311 = smul.addr %s310, 4
          %s312 = scalar_lea.vmem %s2, %s311
          %s313 = smul.u32 16, %s30
        $region24: #{tpu_custom_call.1} parent=11 // pred_fallthru
          _
        // Predicated region
        $region25: #{tpu_custom_call.1} parent=11 // pred_check
          %p314 = pneg %p134
        $region26: #{tpu_custom_call.1} parent=11 // pred_check_branch
          %316 = sbr.rel (%p314) target = $region28
        $region27: #{tpu_custom_call.1} parent=11 // pred_region
          %s318 = ssub.s32 128, 128
          %319 = vsyncadd [#allocation9], %s318
          %s321 = sshll.u32 [#allocation8], 4
          %s322 = int_to_ptr.vmem [resolvable:$true] %s321
          %324 = dma.hbm_to_vmem [thread:$0]  %s3, 128, %s322, [#allocation9]
        $region28: #{tpu_custom_call.1} parent=11 // pred_fallthru
          _
        // Predicated region
        $region29: #{tpu_custom_call.1} parent=11 // pred_check
          %p325 = pneg %p181
        $region30: #{tpu_custom_call.1} parent=11 // pred_check_branch
          %327 = sbr.rel (%p325) target = $region32
        $region31: #{tpu_custom_call.1} parent=11 // pred_region
          %s329 = ssub.s32 2048, 2048
          %330 = vsyncadd [#allocation9], %s329
          %s331 = sshll.u32 [#allocation11], 4
          %s332 = int_to_ptr.vmem [resolvable:$true] %s331
          %337 = dma.hbm_to_vmem [thread:$0]  %s5, 2048, %s332, [#allocation9], 64, 64, 4
        $region32: #{tpu_custom_call.1} parent=11 // pred_fallthru
          _
        // Predicated region
        $region33: #{tpu_custom_call.1} parent=11 // pred_check
          %p338 = pneg %p202
        $region34: #{tpu_custom_call.1} parent=11 // pred_check_branch
          %340 = sbr.rel (%p338) target = $region36
        $region35: #{tpu_custom_call.1} parent=11 // pred_region
          %s342 = ssub.s32 1024, 1024
          %343 = vsyncadd [#allocation13], %s342
          %s344 = sshll.u32 [#allocation12], 4
          %s345 = int_to_ptr.vmem [resolvable:$true] %s344
          %350 = dma.hbm_to_vmem [thread:$0]  %s6, 1024, %s345, [#allocation13], 64, 64, 4
        $region36: #{tpu_custom_call.1} parent=11 // pred_fallthru
          _
        // Predicated region
        $region37: #{tpu_custom_call.1} parent=11 // pred_check
          %p351 = pneg %p223
        $region38: #{tpu_custom_call.1} parent=11 // pred_check_branch
          %353 = sbr.rel (%p351) target = $region40
        $region39: #{tpu_custom_call.1} parent=11 // pred_region
          %s355 = ssub.s32 2048, 2048
          %356 = vsyncadd [#allocation13], %s355
          %s357 = sshll.u32 [#allocation14], 4
          %s358 = int_to_ptr.vmem [resolvable:$true] %s357
          %363 = dma.hbm_to_vmem [thread:$0]  %s7, 2048, %s358, [#allocation13], 64, 64, 4
        $region40: #{tpu_custom_call.1} parent=11 // pred_fallthru
          _
        // Predicated region
        $region41: #{tpu_custom_call.1} parent=11 // pred_check
          %p364 = pneg %p244
        $region42: #{tpu_custom_call.1} parent=11 // pred_check_branch
          %366 = sbr.rel (%p364) target = $region44
        $region43: #{tpu_custom_call.1} parent=11 // pred_region
          _
        $region44: #{tpu_custom_call.1} parent=11 // pred_fallthru
          _
      $region12: #{tpu_custom_call.1} parent=5 // pred_fallthru
        _
      %p367 = scmp.lt.s32.totalorder %s19, 2
      // Predicated region
      $region45: #{tpu_custom_call.1} parent=5 // pred_check
        %p368 = pneg %p367
      $region46: #{tpu_custom_call.1} parent=5 // pred_check_branch
        %370 = sbr.rel (%p368) target = $region48
      $region47: #{tpu_custom_call.1} parent=5 // pred_region
        // Predicated region
        $region49: #{tpu_custom_call.1} parent=47 // pred_check
          %p371 = pneg %p154
        $region50: #{tpu_custom_call.1} parent=47 // pred_check_branch
          %373 = sbr.rel (%p371) target = $region52
        $region51: #{tpu_custom_call.1} parent=47 // pred_region
          %s374 = sand.u32 %s19, 1
          %s375 = scalar_lea.sflag [#allocation6], %s374
          %s376 = sand.u32 %s144, 1
          %s377 = smul.addr %s376, 64
          %s378 = scalar_lea.vmem [#allocation10], %s377
          %s380 = ssub.s32 1024, 1024
          %381 = vsyncadd %s375, %s380
          %s382 = smul.addr %s26, 16
          %s383 = smul.addr %s382, 64
          %s384 = scalar_lea.hbm %s4, %s383
          %s385 = sshll.u32 %s378, 4
          %s386 = int_to_ptr.vmem [resolvable:$true] %s385
          %391 = dma.hbm_to_vmem [thread:$0]  %s384, 1024, %s386, %s375, 64, 64, 4
        $region52: #{tpu_custom_call.1} parent=47 // pred_fallthru
          _
      $region48: #{tpu_custom_call.1} parent=5 // pred_fallthru
        _
      %p392 = scmp.le.s32.totalorder 1, %s19
      %p393 = scmp.lt.s32.totalorder %s19, 3
      %p394 = pnand %p392, %p393
      %p395 = pneg %p394
      // Predicated region
      $region53: #{tpu_custom_call.1} parent=5 // pred_check
        _
      $region54: #{tpu_custom_call.1} parent=5 // pred_check_branch
        %397 = sbr.rel (%p394) target = $region56
      $region55: #{tpu_custom_call.1} parent=5 // pred_region
        %s398 = ssub.s32 %s19, 1
        // Predicated region
        $region57: #{tpu_custom_call.1} parent=55 // pred_check
          %p399 = pneg %p87
        $region58: #{tpu_custom_call.1} parent=55 // pred_check_branch
          %401 = sbr.rel (%p399) target = $region60
        $region59: #{tpu_custom_call.1} parent=55 // pred_region
          %402 = dma.done [#allocation6], 1024
        $region60: #{tpu_custom_call.1} parent=55 // pred_fallthru
          _
        // Predicated region
        $region61: #{tpu_custom_call.1} parent=55 // pred_check
          %p403 = pneg %p134
        $region62: #{tpu_custom_call.1} parent=55 // pred_check_branch
          %405 = sbr.rel (%p403) target = $region64
        $region63: #{tpu_custom_call.1} parent=55 // pred_region
          %406 = dma.done [#allocation9], 128
        $region64: #{tpu_custom_call.1} parent=55 // pred_fallthru
          _
        %s407 = sand.u32 %s24, 1
        %s408 = scalar_lea.sflag [#allocation6], %s407
        %s409 = sand.u32 %s147, 1
        %s410 = smul.addr %s409, 64
        %s411 = scalar_lea.vmem [#allocation10], %s410
        // Predicated region
        $region65: #{tpu_custom_call.1} parent=55 // pred_check
          %p412 = pneg %p160
        $region66: #{tpu_custom_call.1} parent=55 // pred_check_branch
          %414 = sbr.rel (%p412) target = $region68
        $region67: #{tpu_custom_call.1} parent=55 // pred_region
          %415 = dma.done %s408, 1024
        $region68: #{tpu_custom_call.1} parent=55 // pred_fallthru
          _
        // Predicated region
        $region69: #{tpu_custom_call.1} parent=55 // pred_check
          %p416 = pneg %p181
        $region70: #{tpu_custom_call.1} parent=55 // pred_check_branch
          %418 = sbr.rel (%p416) target = $region72
        $region71: #{tpu_custom_call.1} parent=55 // pred_region
          %419 = dma.done [#allocation9], 2048
        $region72: #{tpu_custom_call.1} parent=55 // pred_fallthru
          _
        // Predicated region
        $region73: #{tpu_custom_call.1} parent=55 // pred_check
          %p420 = pneg %p202
        $region74: #{tpu_custom_call.1} parent=55 // pred_check_branch
          %422 = sbr.rel (%p420) target = $region76
        $region75: #{tpu_custom_call.1} parent=55 // pred_region
          %423 = dma.done [#allocation13], 1024
        $region76: #{tpu_custom_call.1} parent=55 // pred_fallthru
          _
        // Predicated region
        $region77: #{tpu_custom_call.1} parent=55 // pred_check
          %p424 = pneg %p223
        $region78: #{tpu_custom_call.1} parent=55 // pred_check_branch
          %426 = sbr.rel (%p424) target = $region80
        $region79: #{tpu_custom_call.1} parent=55 // pred_region
          %427 = dma.done [#allocation13], 2048
        $region80: #{tpu_custom_call.1} parent=55 // pred_fallthru
          _
        %s428 = smul.u32 16, %s30
        %p429 = scmp.lt.s32.totalorder %s428, 15
        %s430 = scalar_select %p429, %s428, 15
        %p431 = scmp.lt.s32.totalorder %s31, 0
        %s432 = scalar_select %p431, %s31, 0
        %s433 = sadd.s32 %s432, %s430
        %s434 = smul.addr %s433, 4
        %s435 = scalar_lea.vmem %s0, %s434
        %p436 = pneg %p66
        %p437 = pneg %p63
        %p438 = pneg %p87
        %p439 = pneg %p84
        %s440 = smul.u32 16, %s30
        %p441 = scmp.lt.s32.totalorder %s440, 15
        %s442 = scalar_select %p441, %s440, 15
        %s443 = smul.addr %s442, 4
        %s444 = scalar_lea.vmem %s2, %s443
        %p445 = pneg %p113
        %p446 = pneg %p110
        %p447 = pneg %p134
        %p448 = pneg %p131
        %s449 = sand.u32 %s24, 1
        %s450 = scalar_lea.sflag [#allocation6], %s449
        %s451 = sand.u32 %s147, 1
        %s452 = smul.addr %s451, 64
        %s453 = scalar_lea.vmem [#allocation10], %s452
        %p454 = pneg %p160
        %p455 = pneg %p157
        %p456 = pneg %p181
        %p457 = pneg %p178
        %p458 = pneg %p202
        %p459 = pneg %p199
        %p460 = pneg %p223
        %p461 = pneg %p220
        %p462 = pneg %p244
        %p463 = pneg %p241
        %p464 = pneg %p265
        %p465 = pneg %p262
        %s466 = smul.u32 16, %s30
        %p467 = scmp.lt.s32.totalorder %s466, 15
        %s468 = scalar_select %p467, %s466, 15
        %p469 = scmp.lt.s32.totalorder %s31, 0
        %s470 = scalar_select %p469, %s31, 0
        %s471 = sadd.s32 %s470, %s468
        %s472 = smul.addr %s471, 4
        %s473 = scalar_lea.vmem %s0, %s472
        %s474 = smul.u32 16, %s30
        %s475 = smul.u32 16, %s30
        %p476 = scmp.lt.s32.totalorder %s475, 15
        %s477 = scalar_select %p476, %s475, 15
        %s478 = smul.addr %s477, 4
        %s479 = scalar_lea.vmem %s2, %s478
        %s480 = smul.u32 16, %s30
        %s482 = sand.u32 %s29, 1
        %s483 = smul.u32 %s482, 128
        %s484 = ssub.s32 1, %s482
        %s485 = smul.u32 %s484, 128
        %p486 = scmp.eq.s32.totalorder %s29, 0
        %p487 = scmp.eq.s32.totalorder %s30, 0
        %p488 = pnand %p486, %p487
        %p489 = pneg %p488
        %p490 = scmp.eq.s32.totalorder %s31, 0
        %p491 = pnand %p489, %p490
        %p492 = pneg %p491
        // Predicated region
        $region81: #{tpu_custom_call.1} parent=55 // pred_check
          _
        $region82: #{tpu_custom_call.1} parent=55 // pred_check_branch
          %494 = sbr.rel (%p491) target = $region84
        $region83: #{tpu_custom_call.1} parent=55 // pred_region
          %495 = vst [vmem:[#allocation4] sm:$0xff] 0.0
          %496 = vst [vmem:[#allocation4 + $0x8] sm:$0xff] 0.0
          %v497 = vld [vmem:[#allocation5] sm:$0xf]
          %v498 = vld [vmem:[#allocation5 + $0x4] sm:$0xf]
          %v499 = vld [vmem:[#allocation5 + $0x8] sm:$0xf]
          %v500 = vld [vmem:[#allocation5 + $0xc] sm:$0xf]
          %v501 = vld [vmem:[#allocation5 + $0x10] sm:$0xf]
          %v502 = vld [vmem:[#allocation5 + $0x14] sm:$0xf]
          %v503 = vld [vmem:[#allocation5 + $0x18] sm:$0xf]
          %v504 = vld [vmem:[#allocation5 + $0x1c] sm:$0xf]
          %v505 = vld [vmem:[#allocation5 + $0x20] sm:$0xf]
          %v506 = vld [vmem:[#allocation5 + $0x24] sm:$0xf]
          %v507 = vld [vmem:[#allocation5 + $0x28] sm:$0xf]
          %v508 = vld [vmem:[#allocation5 + $0x2c] sm:$0xf]
          %v509 = vld [vmem:[#allocation5 + $0x30] sm:$0xf]
          %v510 = vld [vmem:[#allocation5 + $0x34] sm:$0xf]
          %v511 = vld [vmem:[#allocation5 + $0x38] sm:$0xf]
          %v512 = vld [vmem:[#allocation5 + $0x3c] sm:$0xf]
          %513 = vst [vmem:[#allocation2] sm:$0xf] %v497
          %514 = vst [vmem:[#allocation2 + $0x4] sm:$0xf] %v498
          %515 = vst [vmem:[#allocation2 + $0x8] sm:$0xf] %v499
          %516 = vst [vmem:[#allocation2 + $0xc] sm:$0xf] %v500
          %517 = vst [vmem:[#allocation2 + $0x10] sm:$0xf] %v501
          %518 = vst [vmem:[#allocation2 + $0x14] sm:$0xf] %v502
          %519 = vst [vmem:[#allocation2 + $0x18] sm:$0xf] %v503
          %520 = vst [vmem:[#allocation2 + $0x1c] sm:$0xf] %v504
          %521 = vst [vmem:[#allocation2 + $0x20] sm:$0xf] %v505
          %522 = vst [vmem:[#allocation2 + $0x24] sm:$0xf] %v506
          %523 = vst [vmem:[#allocation2 + $0x28] sm:$0xf] %v507
          %524 = vst [vmem:[#allocation2 + $0x2c] sm:$0xf] %v508
          %525 = vst [vmem:[#allocation2 + $0x30] sm:$0xf] %v509
          %526 = vst [vmem:[#allocation2 + $0x34] sm:$0xf] %v510
          %527 = vst [vmem:[#allocation2 + $0x38] sm:$0xf] %v511
          %528 = vst [vmem:[#allocation2 + $0x3c] sm:$0xf] %v512
        $region84: #{tpu_custom_call.1} parent=55 // pred_fallthru
          _
        // Predicated region
        $region85: #{tpu_custom_call.1} parent=55 // pred_check
          %p529 = pneg %p490
        $region86: #{tpu_custom_call.1} parent=55 // pred_check_branch
          %531 = sbr.rel (%p529) target = $region88
        $region87: #{tpu_custom_call.1} parent=55 // pred_region
          %532 = vst [vmem:[#allocation3] sm:$0xff] 0.0
          %533 = vst [vmem:[#allocation3 + $0x8] sm:$0xff] 0.0
          %534 = vst [vmem:[#allocation3 + $0x10] sm:$0xff] 0.0
          %535 = vst [vmem:[#allocation3 + $0x18] sm:$0xff] 0.0
          %536 = vst [vmem:[#allocation3 + $0x20] sm:$0xff] 0.0
          %537 = vst [vmem:[#allocation3 + $0x28] sm:$0xff] 0.0
          %538 = vst [vmem:[#allocation3 + $0x30] sm:$0xff] 0.0
          %539 = vst [vmem:[#allocation3 + $0x38] sm:$0xff] 0.0
          %540 = vst [vmem:[#allocation3 + $0x40] sm:$0xff] 0.0
          %541 = vst [vmem:[#allocation3 + $0x48] sm:$0xff] 0.0
          %542 = vst [vmem:[#allocation3 + $0x50] sm:$0xff] 0.0
          %543 = vst [vmem:[#allocation3 + $0x58] sm:$0xff] 0.0
          %544 = vst [vmem:[#allocation3 + $0x60] sm:$0xff] 0.0
          %545 = vst [vmem:[#allocation3 + $0x68] sm:$0xff] 0.0
          %546 = vst [vmem:[#allocation3 + $0x70] sm:$0xff] 0.0
          %547 = vst [vmem:[#allocation3 + $0x78] sm:$0xff] 0.0
        $region88: #{tpu_custom_call.1} parent=55 // pred_fallthru
          _
        %s548 = smul.u32 %s31, 128
        %s549 = sadd.s32 %s483, %s548
        %s550 = sshra.s32 %s549, 3
        %s551 = sand.u32 %s549, 7
        %s552 = smul.addr %s550, 4
        %s553 = scalar_lea.vmem [#allocation2], %s552
        %v554 = vld [vmem:[%s553] sm:$0xf]
        %v555 = vld [vmem:[%s553 + $0x4] sm:$0xf]
        %v556 = vld [vmem:[%s553 + $0x8] sm:$0xf]
        %v557 = vld [vmem:[%s553 + $0xc] sm:$0xf]
        %v558 = vld [vmem:[%s553 + $0x10] sm:$0xf]
        %v559 = vld [vmem:[%s553 + $0x14] sm:$0xf]
        %v560 = vld [vmem:[%s553 + $0x18] sm:$0xf]
        %v561 = vld [vmem:[%s553 + $0x1c] sm:$0xf]
        %v562 = vld [vmem:[%s553 + $0x20] sm:$0xf]
        %v563 = vld [vmem:[%s553 + $0x24] sm:$0xf]
        %v564 = vld [vmem:[%s553 + $0x28] sm:$0xf]
        %v565 = vld [vmem:[%s553 + $0x2c] sm:$0xf]
        %v566 = vld [vmem:[%s553 + $0x30] sm:$0xf]
        %v567 = vld [vmem:[%s553 + $0x34] sm:$0xf]
        %v568 = vld [vmem:[%s553 + $0x38] sm:$0xf]
        %v569 = vld [vmem:[%s553 + $0x3c] sm:$0xf]
        %v570 = vld [vmem:[#allocation3] sm:$0xff]
        %v571 = vld [vmem:[#allocation3 + $0x8] sm:$0xff]
        %v572 = vld [vmem:[#allocation3 + $0x10] sm:$0xff]
        %v573 = vld [vmem:[#allocation3 + $0x18] sm:$0xff]
        %v574 = vld [vmem:[#allocation3 + $0x20] sm:$0xff]
        %v575 = vld [vmem:[#allocation3 + $0x28] sm:$0xff]
        %v576 = vld [vmem:[#allocation3 + $0x30] sm:$0xff]
        %v577 = vld [vmem:[#allocation3 + $0x38] sm:$0xff]
        %v578 = vld [vmem:[#allocation3 + $0x40] sm:$0xff]
        %v579 = vld [vmem:[#allocation3 + $0x48] sm:$0xff]
        %v580 = vld [vmem:[#allocation3 + $0x50] sm:$0xff]
        %v581 = vld [vmem:[#allocation3 + $0x58] sm:$0xff]
        %v582 = vld [vmem:[#allocation3 + $0x60] sm:$0xff]
        %v583 = vld [vmem:[#allocation3 + $0x68] sm:$0xff]
        %v584 = vld [vmem:[#allocation3 + $0x70] sm:$0xff]
        %v585 = vld [vmem:[#allocation3 + $0x78] sm:$0xff]
        %v586 = vld [vmem:[%s473] sm:$0xf]
        %v587 = vld [vmem:[%s473 + $0x4] sm:$0xf]
        %v588 = vld [vmem:[%s473 + $0x8] sm:$0xf]
        %v589 = vld [vmem:[%s473 + $0xc] sm:$0xf]
        %v590 = vld [vmem:[%s473 + $0x10] sm:$0xf]
        %v591 = vld [vmem:[%s473 + $0x14] sm:$0xf]
        %v592 = vld [vmem:[%s473 + $0x18] sm:$0xf]
        %v593 = vld [vmem:[%s473 + $0x1c] sm:$0xf]
        %v594 = vld [vmem:[%s473 + $0x20] sm:$0xf]
        %v595 = vld [vmem:[%s473 + $0x24] sm:$0xf]
        %v596 = vld [vmem:[%s473 + $0x28] sm:$0xf]
        %v597 = vld [vmem:[%s473 + $0x2c] sm:$0xf]
        %v598 = vld [vmem:[%s473 + $0x30] sm:$0xf]
        %v599 = vld [vmem:[%s473 + $0x34] sm:$0xf]
        %v600 = vld [vmem:[%s473 + $0x38] sm:$0xf]
        %v601 = vld [vmem:[%s473 + $0x3c] sm:$0xf]
        %v618 = vunpack.c.l.b16 %v586
        %v619 = vunpack.c.l.b16 %v587
        %v620 = vunpack.c.l.b16 %v588
        %v621 = vunpack.c.l.b16 %v589
        %v622 = vunpack.c.l.b16 %v590
        %v623 = vunpack.c.l.b16 %v591
        %v624 = vunpack.c.l.b16 %v592
        %v625 = vunpack.c.l.b16 %v593
        %v626 = vunpack.c.l.b16 %v594
        %v627 = vunpack.c.l.b16 %v595
        %v628 = vunpack.c.l.b16 %v596
        %v629 = vunpack.c.l.b16 %v597
        %v630 = vunpack.c.l.b16 %v598
        %v631 = vunpack.c.l.b16 %v599
        %v632 = vunpack.c.l.b16 %v600
        %v633 = vunpack.c.l.b16 %v601
        %v634 = vpack.c.b16 %v619, %v618
        %v635 = vpack.c.b16 %v621, %v620
        %v636 = vpack.c.b16 %v623, %v622
        %v637 = vpack.c.b16 %v625, %v624
        %v638 = vpack.c.b16 %v627, %v626
        %v639 = vpack.c.b16 %v629, %v628
        %v640 = vpack.c.b16 %v631, %v630
        %v641 = vpack.c.b16 %v633, %v632
        %v666 = vunpack.c.l.b16 %v554
        %v667 = vunpack.c.l.b16 %v555
        %v668 = vunpack.c.l.b16 %v556
        %v669 = vunpack.c.l.b16 %v557
        %v670 = vunpack.c.l.b16 %v558
        %v671 = vunpack.c.l.b16 %v559
        %v672 = vunpack.c.l.b16 %v560
        %v673 = vunpack.c.l.b16 %v561
        %v674 = vunpack.c.l.b16 %v562
        %v675 = vunpack.c.l.b16 %v563
        %v676 = vunpack.c.l.b16 %v564
        %v677 = vunpack.c.l.b16 %v565
        %v678 = vunpack.c.l.b16 %v566
        %v679 = vunpack.c.l.b16 %v567
        %v680 = vunpack.c.l.b16 %v568
        %v681 = vunpack.c.l.b16 %v569
        %v682 = vpack.c.b16 %v667, %v666
        %v683 = vpack.c.b16 %v669, %v668
        %v684 = vpack.c.b16 %v671, %v670
        %v685 = vpack.c.b16 %v673, %v672
        %v686 = vpack.c.b16 %v675, %v674
        %v687 = vpack.c.b16 %v677, %v676
        %v688 = vpack.c.b16 %v679, %v678
        %v689 = vpack.c.b16 %v681, %v680
        %698 = vmatprep.subr.bf16.mxu0 0
        %699 = vmatpush1.bf16.msra.mxu0 %v689
        %700 = vmatprep.subr.bf16.mxu0 0
        %701 = vmatpush1.bf16.msra.mxu0 %v688
        %702 = vmatprep.subr.bf16.mxu0 0
        %703 = vmatpush1.bf16.msra.mxu0 %v687
        %704 = vmatprep.subr.bf16.mxu0 0
        %705 = vmatpush1.bf16.msra.mxu0 %v686
        %706 = vmatprep.subr.bf16.mxu0 0
        %707 = vmatpush1.bf16.msra.mxu0 %v685
        %708 = vmatprep.subr.bf16.mxu0 0
        %709 = vmatpush1.bf16.msra.mxu0 %v684
        %710 = vmatprep.subr.bf16.mxu0 0
        %711 = vmatpush1.bf16.msra.mxu0 %v683
        %712 = vmatprep.subr.bf16.mxu0 0
        %713 = vmatpush1.bf16.msra.mxu0 %v682
        %714 = vmatprep.subr.bf16.mxu0 0
        %715 = vmatpush2.bf16.msra.mxu0 0
        %716 = vmatprep.subr.bf16.mxu0 0
        %717 = vmatpush2.bf16.msra.mxu0 0
        %718 = vmatprep.subr.bf16.mxu0 0
        %719 = vmatpush2.bf16.msra.mxu0 0
        %720 = vmatprep.subr.bf16.mxu0 0
        %721 = vmatpush2.bf16.msra.mxu0 0
        %722 = vmatprep.subr.bf16.mxu0 0
        %723 = vmatpush2.bf16.msra.mxu0 0
        %724 = vmatprep.subr.bf16.mxu0 0
        %725 = vmatpush2.bf16.msra.mxu0 0
        %726 = vmatprep.subr.bf16.mxu0 0
        %727 = vmatpush2.bf16.msra.mxu0 0
        %728 = vmatprep.subr.bf16.mxu0 0
        %729 = vmatpush2.bf16.msra.mxu0 0
        %730 = vmatprep.mubr.bf16.mxu0 0
        %731 = vmatmul.mubr.bf16.gmra.mxu0 %v634
        %v732 = vpop.f32.mrf.mxu0
        %v733 = vadd.f32 0.0, %v732
        %v734 = vpop.f32.mrf.mxu0
        %v735 = vpop.f32.mrf.mxu0
        %v736 = vadd.f32 0.0, %v735
        %v737 = vpop.f32.mrf.mxu0
        %738 = vmatprep.mubr.bf16.mxu0 0
        %739 = vmatmul.mubr.bf16.gmra.mxu0 %v635
        %v740 = vpop.f32.mrf.mxu0
        %v741 = vadd.f32 0.0, %v740
        %v742 = vpop.f32.mrf.mxu0
        %v743 = vpop.f32.mrf.mxu0
        %v744 = vadd.f32 0.0, %v743
        %v745 = vpop.f32.mrf.mxu0
        %746 = vmatprep.mubr.bf16.mxu0 0
        %747 = vmatmul.mubr.bf16.gmra.mxu0 %v636
        %v748 = vpop.f32.mrf.mxu0
        %v749 = vadd.f32 0.0, %v748
        %v750 = vpop.f32.mrf.mxu0
        %v751 = vpop.f32.mrf.mxu0
        %v752 = vadd.f32 0.0, %v751
        %v753 = vpop.f32.mrf.mxu0
        %754 = vmatprep.mubr.bf16.mxu0 0
        %755 = vmatmul.mubr.bf16.gmra.mxu0 %v637
        %v756 = vpop.f32.mrf.mxu0
        %v757 = vadd.f32 0.0, %v756
        %v758 = vpop.f32.mrf.mxu0
        %v759 = vpop.f32.mrf.mxu0
        %v760 = vadd.f32 0.0, %v759
        %v761 = vpop.f32.mrf.mxu0
        %762 = vmatprep.mubr.bf16.mxu0 0
        %763 = vmatmul.mubr.bf16.gmra.mxu0 %v638
        %v764 = vpop.f32.mrf.mxu0
        %v765 = vadd.f32 0.0, %v764
        %v766 = vpop.f32.mrf.mxu0
        %v767 = vpop.f32.mrf.mxu0
        %v768 = vadd.f32 0.0, %v767
        %v769 = vpop.f32.mrf.mxu0
        %770 = vmatprep.mubr.bf16.mxu0 0
        %771 = vmatmul.mubr.bf16.gmra.mxu0 %v639
        %v772 = vpop.f32.mrf.mxu0
        %v773 = vadd.f32 0.0, %v772
        %v774 = vpop.f32.mrf.mxu0
        %v775 = vpop.f32.mrf.mxu0
        %v776 = vadd.f32 0.0, %v775
        %v777 = vpop.f32.mrf.mxu0
        %778 = vmatprep.mubr.bf16.mxu0 0
        %779 = vmatmul.mubr.bf16.gmra.mxu0 %v640
        %v780 = vpop.f32.mrf.mxu0
        %v781 = vadd.f32 0.0, %v780
        %v782 = vpop.f32.mrf.mxu0
        %v783 = vpop.f32.mrf.mxu0
        %v784 = vadd.f32 0.0, %v783
        %v785 = vpop.f32.mrf.mxu0
        %786 = vmatprep.mubr.bf16.mxu0 0
        %787 = vmatmul.mubr.bf16.gmra.mxu0 %v641
        %v788 = vpop.f32.mrf.mxu0
        %v789 = vadd.f32 0.0, %v788
        %v790 = vpop.f32.mrf.mxu0
        %v791 = vpop.f32.mrf.mxu0
        %v792 = vadd.f32 0.0, %v791
        %v793 = vpop.f32.mrf.mxu0
        %794 = vdwg.mxu0
        %v795 = vadd.f32 %v570, %v733
        %v796 = vadd.f32 %v571, %v736
        %v797 = vadd.f32 %v572, %v741
        %v798 = vadd.f32 %v573, %v744
        %v799 = vadd.f32 %v574, %v749
        %v800 = vadd.f32 %v575, %v752
        %v801 = vadd.f32 %v576, %v757
        %v802 = vadd.f32 %v577, %v760
        %v803 = vadd.f32 %v578, %v765
        %v804 = vadd.f32 %v579, %v768
        %v805 = vadd.f32 %v580, %v773
        %v806 = vadd.f32 %v581, %v776
        %v807 = vadd.f32 %v582, %v781
        %v808 = vadd.f32 %v583, %v784
        %v809 = vadd.f32 %v584, %v789
        %v810 = vadd.f32 %v585, %v792
        %811 = vst [vmem:[#allocation3] sm:$0xff] %v795
        %812 = vst [vmem:[#allocation3 + $0x8] sm:$0xff] %v796
        %813 = vst [vmem:[#allocation3 + $0x10] sm:$0xff] %v797
        %814 = vst [vmem:[#allocation3 + $0x18] sm:$0xff] %v798
        %815 = vst [vmem:[#allocation3 + $0x20] sm:$0xff] %v799
        %816 = vst [vmem:[#allocation3 + $0x28] sm:$0xff] %v800
        %817 = vst [vmem:[#allocation3 + $0x30] sm:$0xff] %v801
        %818 = vst [vmem:[#allocation3 + $0x38] sm:$0xff] %v802
        %819 = vst [vmem:[#allocation3 + $0x40] sm:$0xff] %v803
        %820 = vst [vmem:[#allocation3 + $0x48] sm:$0xff] %v804
        %821 = vst [vmem:[#allocation3 + $0x50] sm:$0xff] %v805
        %822 = vst [vmem:[#allocation3 + $0x58] sm:$0xff] %v806
        %823 = vst [vmem:[#allocation3 + $0x60] sm:$0xff] %v807
        %824 = vst [vmem:[#allocation3 + $0x68] sm:$0xff] %v808
        %825 = vst [vmem:[#allocation3 + $0x70] sm:$0xff] %v809
        %826 = vst [vmem:[#allocation3 + $0x78] sm:$0xff] %v810
        // Predicated region
        $region89: #{tpu_custom_call.1} parent=55 // pred_check
          %p827 = pneg %p490
        $region90: #{tpu_custom_call.1} parent=55 // pred_check_branch
          %829 = sbr.rel (%p827) target = $region92
        $region91: #{tpu_custom_call.1} parent=55 // pred_region
          %v830 = vld [vmem:[%s411] sm:$0xf]
          %v831 = vld [vmem:[%s411 + $0x4] sm:$0xf]
          %v832 = vld [vmem:[%s411 + $0x8] sm:$0xf]
          %v833 = vld [vmem:[%s411 + $0xc] sm:$0xf]
          %v834 = vld [vmem:[%s411 + $0x10] sm:$0xf]
          %v835 = vld [vmem:[%s411 + $0x14] sm:$0xf]
          %v836 = vld [vmem:[%s411 + $0x18] sm:$0xf]
          %v837 = vld [vmem:[%s411 + $0x1c] sm:$0xf]
          %v838 = vld [vmem:[%s411 + $0x20] sm:$0xf]
          %v839 = vld [vmem:[%s411 + $0x24] sm:$0xf]
          %v840 = vld [vmem:[%s411 + $0x28] sm:$0xf]
          %v841 = vld [vmem:[%s411 + $0x2c] sm:$0xf]
          %v842 = vld [vmem:[%s411 + $0x30] sm:$0xf]
          %v843 = vld [vmem:[%s411 + $0x34] sm:$0xf]
          %v844 = vld [vmem:[%s411 + $0x38] sm:$0xf]
          %v845 = vld [vmem:[%s411 + $0x3c] sm:$0xf]
          %s846 = scalar_lea.vmem %s8, %s29
          %v847 = vld [vmem:[%s846] sm:$0x1]
          %v848 = vld [vmem:[#allocation3] sm:$0xff]
          %v849 = vld [vmem:[#allocation3 + $0x8] sm:$0xff]
          %v850 = vld [vmem:[#allocation3 + $0x10] sm:$0xff]
          %v851 = vld [vmem:[#allocation3 + $0x18] sm:$0xff]
          %v852 = vld [vmem:[#allocation3 + $0x20] sm:$0xff]
          %v853 = vld [vmem:[#allocation3 + $0x28] sm:$0xff]
          %v854 = vld [vmem:[#allocation3 + $0x30] sm:$0xff]
          %v855 = vld [vmem:[#allocation3 + $0x38] sm:$0xff]
          %v856 = vld [vmem:[#allocation3 + $0x40] sm:$0xff]
          %v857 = vld [vmem:[#allocation3 + $0x48] sm:$0xff]
          %v858 = vld [vmem:[#allocation3 + $0x50] sm:$0xff]
          %v859 = vld [vmem:[#allocation3 + $0x58] sm:$0xff]
          %v860 = vld [vmem:[#allocation3 + $0x60] sm:$0xff]
          %v861 = vld [vmem:[#allocation3 + $0x68] sm:$0xff]
          %v862 = vld [vmem:[#allocation3 + $0x70] sm:$0xff]
          %v863 = vld [vmem:[#allocation3 + $0x78] sm:$0xff]
          %v864 = vpack.c.bf16 %v849, %v848
          %v865 = vpack.c.bf16 %v851, %v850
          %v866 = vpack.c.bf16 %v853, %v852
          %v867 = vpack.c.bf16 %v855, %v854
          %v868 = vpack.c.bf16 %v857, %v856
          %v869 = vpack.c.bf16 %v859, %v858
          %v870 = vpack.c.bf16 %v861, %v860
          %v871 = vpack.c.bf16 %v863, %v862
          %v872 = vlaneseq
          %v873 = vshrl.u32 %v872, 7
          %v874 = vsub.s32 0, %v873
          %v875 = vrot.slane %v847, %v874
          %v892 = vunpack.c.l.b16 %v830
          %v893 = vunpack.c.l.b16 %v831
          %v894 = vunpack.c.l.b16 %v832
          %v895 = vunpack.c.l.b16 %v833
          %v896 = vunpack.c.l.b16 %v834
          %v897 = vunpack.c.l.b16 %v835
          %v898 = vunpack.c.l.b16 %v836
          %v899 = vunpack.c.l.b16 %v837
          %v900 = vunpack.c.l.b16 %v838
          %v901 = vunpack.c.l.b16 %v839
          %v902 = vunpack.c.l.b16 %v840
          %v903 = vunpack.c.l.b16 %v841
          %v904 = vunpack.c.l.b16 %v842
          %v905 = vunpack.c.l.b16 %v843
          %v906 = vunpack.c.l.b16 %v844
          %v907 = vunpack.c.l.b16 %v845
          %v908 = vpack.c.b16 %v893, %v892
          %v909 = vpack.c.b16 %v895, %v894
          %v910 = vpack.c.b16 %v897, %v896
          %v911 = vpack.c.b16 %v899, %v898
          %v912 = vpack.c.b16 %v901, %v900
          %v913 = vpack.c.b16 %v903, %v902
          %v914 = vpack.c.b16 %v905, %v904
          %v915 = vpack.c.b16 %v907, %v906
          %924 = vmatprep.subr.bf16.mxu0 0
          %925 = vmatpush1.bf16.msra.mxu0 %v915
          %926 = vmatprep.subr.bf16.mxu0 0
          %927 = vmatpush1.bf16.msra.mxu0 %v914
          %928 = vmatprep.subr.bf16.mxu0 0
          %929 = vmatpush1.bf16.msra.mxu0 %v913
          %930 = vmatprep.subr.bf16.mxu0 0
          %931 = vmatpush1.bf16.msra.mxu0 %v912
          %932 = vmatprep.subr.bf16.mxu0 0
          %933 = vmatpush1.bf16.msra.mxu0 %v911
          %934 = vmatprep.subr.bf16.mxu0 0
          %935 = vmatpush1.bf16.msra.mxu0 %v910
          %936 = vmatprep.subr.bf16.mxu0 0
          %937 = vmatpush1.bf16.msra.mxu0 %v909
          %938 = vmatprep.subr.bf16.mxu0 0
          %939 = vmatpush1.bf16.msra.mxu0 %v908
          %940 = vmatprep.subr.bf16.mxu0 0
          %941 = vmatpush2.bf16.msra.mxu0 0
          %942 = vmatprep.subr.bf16.mxu0 0
          %943 = vmatpush2.bf16.msra.mxu0 0
          %944 = vmatprep.subr.bf16.mxu0 0
          %945 = vmatpush2.bf16.msra.mxu0 0
          %946 = vmatprep.subr.bf16.mxu0 0
          %947 = vmatpush2.bf16.msra.mxu0 0
          %948 = vmatprep.subr.bf16.mxu0 0
          %949 = vmatpush2.bf16.msra.mxu0 0
          %950 = vmatprep.subr.bf16.mxu0 0
          %951 = vmatpush2.bf16.msra.mxu0 0
          %952 = vmatprep.subr.bf16.mxu0 0
          %953 = vmatpush2.bf16.msra.mxu0 0
          %954 = vmatprep.subr.bf16.mxu0 0
          %955 = vmatpush2.bf16.msra.mxu0 0
          %956 = vmatprep.mubr.bf16.mxu0 0
          %957 = vmatmul.mubr.bf16.gmra.mxu0 %v864
          %v958 = vpop.f32.mrf.mxu0
          %v959 = vadd.f32 %v875, %v958
          %v960 = vpop.f32.mrf.mxu0
          %v961 = vpop.f32.mrf.mxu0
          %v962 = vadd.f32 %v875, %v961
          %v963 = vpop.f32.mrf.mxu0
          %964 = vmatprep.mubr.bf16.mxu0 0
          %965 = vmatmul.mubr.bf16.gmra.mxu0 %v865
          %v966 = vpop.f32.mrf.mxu0
          %v967 = vadd.f32 %v875, %v966
          %v968 = vpop.f32.mrf.mxu0
          %v969 = vpop.f32.mrf.mxu0
          %v970 = vadd.f32 %v875, %v969
          %v971 = vpop.f32.mrf.mxu0
          %972 = vmatprep.mubr.bf16.mxu0 0
          %973 = vmatmul.mubr.bf16.gmra.mxu0 %v866
          %v974 = vpop.f32.mrf.mxu0
          %v975 = vadd.f32 %v875, %v974
          %v976 = vpop.f32.mrf.mxu0
          %v977 = vpop.f32.mrf.mxu0
          %v978 = vadd.f32 %v875, %v977
          %v979 = vpop.f32.mrf.mxu0
          %980 = vmatprep.mubr.bf16.mxu0 0
          %981 = vmatmul.mubr.bf16.gmra.mxu0 %v867
          %v982 = vpop.f32.mrf.mxu0
          %v983 = vadd.f32 %v875, %v982
          %v984 = vpop.f32.mrf.mxu0
          %v985 = vpop.f32.mrf.mxu0
          %v986 = vadd.f32 %v875, %v985
          %v987 = vpop.f32.mrf.mxu0
          %988 = vmatprep.mubr.bf16.mxu0 0
          %989 = vmatmul.mubr.bf16.gmra.mxu0 %v868
          %v990 = vpop.f32.mrf.mxu0
          %v991 = vadd.f32 %v875, %v990
          %v992 = vpop.f32.mrf.mxu0
          %v993 = vpop.f32.mrf.mxu0
          %v994 = vadd.f32 %v875, %v993
          %v995 = vpop.f32.mrf.mxu0
          %996 = vmatprep.mubr.bf16.mxu0 0
          %997 = vmatmul.mubr.bf16.gmra.mxu0 %v869
          %v998 = vpop.f32.mrf.mxu0
          %v999 = vadd.f32 %v875, %v998
          %v1000 = vpop.f32.mrf.mxu0
          %v1001 = vpop.f32.mrf.mxu0
          %v1002 = vadd.f32 %v875, %v1001
          %v1003 = vpop.f32.mrf.mxu0
          %1004 = vmatprep.mubr.bf16.mxu0 0
          %1005 = vmatmul.mubr.bf16.gmra.mxu0 %v870
          %v1006 = vpop.f32.mrf.mxu0
          %v1007 = vadd.f32 %v875, %v1006
          %v1008 = vpop.f32.mrf.mxu0
          %v1009 = vpop.f32.mrf.mxu0
          %v1010 = vadd.f32 %v875, %v1009
          %v1011 = vpop.f32.mrf.mxu0
          %1012 = vmatprep.mubr.bf16.mxu0 0
          %1013 = vmatmul.mubr.bf16.gmra.mxu0 %v871
          %v1014 = vpop.f32.mrf.mxu0
          %v1015 = vadd.f32 %v875, %v1014
          %v1016 = vpop.f32.mrf.mxu0
          %v1017 = vpop.f32.mrf.mxu0
          %v1018 = vadd.f32 %v875, %v1017
          %v1019 = vpop.f32.mrf.mxu0
          %1020 = vdwg.mxu0
          %v1021 = vmax.f32 %v959, 0.0
          %v1022 = vmax.f32 %v962, 0.0
          %v1023 = vmax.f32 %v967, 0.0
          %v1024 = vmax.f32 %v970, 0.0
          %v1025 = vmax.f32 %v975, 0.0
          %v1026 = vmax.f32 %v978, 0.0
          %v1027 = vmax.f32 %v983, 0.0
          %v1028 = vmax.f32 %v986, 0.0
          %v1029 = vmax.f32 %v991, 0.0
          %v1030 = vmax.f32 %v994, 0.0
          %v1031 = vmax.f32 %v999, 0.0
          %v1032 = vmax.f32 %v1002, 0.0
          %v1033 = vmax.f32 %v1007, 0.0
          %v1034 = vmax.f32 %v1010, 0.0
          %v1035 = vmax.f32 %v1015, 0.0
          %v1036 = vmax.f32 %v1018, 0.0
          %s1037 = smul.u32 %s30, 128
          %s1038 = sadd.s32 %s485, %s1037
          %v1039 = vpack.c.bf16 %v1022, %v1021
          %v1040 = vpack.c.bf16 %v1024, %v1023
          %v1041 = vpack.c.bf16 %v1026, %v1025
          %v1042 = vpack.c.bf16 %v1028, %v1027
          %v1043 = vpack.c.bf16 %v1030, %v1029
          %v1044 = vpack.c.bf16 %v1032, %v1031
          %v1045 = vpack.c.bf16 %v1034, %v1033
          %v1046 = vpack.c.bf16 %v1036, %v1035
          %v1055 = vunpack.c.l.b16 %v1039
          %v1056 = vunpack.c.h.b16 %v1039
          %v1057 = vunpack.c.l.b16 %v1040
          %v1058 = vunpack.c.h.b16 %v1040
          %v1059 = vunpack.c.l.b16 %v1041
          %v1060 = vunpack.c.h.b16 %v1041
          %v1061 = vunpack.c.l.b16 %v1042
          %v1062 = vunpack.c.h.b16 %v1042
          %v1063 = vunpack.c.l.b16 %v1043
          %v1064 = vunpack.c.h.b16 %v1043
          %v1065 = vunpack.c.l.b16 %v1044
          %v1066 = vunpack.c.h.b16 %v1044
          %v1067 = vunpack.c.l.b16 %v1045
          %v1068 = vunpack.c.h.b16 %v1045
          %v1069 = vunpack.c.l.b16 %v1046
          %v1070 = vunpack.c.h.b16 %v1046
          %v1071 = vpack.c.b16 %v1055, %v1055
          %v1072 = vpack.c.b16 %v1056, %v1056
          %v1073 = vpack.c.b16 %v1057, %v1057
          %v1074 = vpack.c.b16 %v1058, %v1058
          %v1075 = vpack.c.b16 %v1059, %v1059
          %v1076 = vpack.c.b16 %v1060, %v1060
          %v1077 = vpack.c.b16 %v1061, %v1061
          %v1078 = vpack.c.b16 %v1062, %v1062
          %v1079 = vpack.c.b16 %v1063, %v1063
          %v1080 = vpack.c.b16 %v1064, %v1064
          %v1081 = vpack.c.b16 %v1065, %v1065
          %v1082 = vpack.c.b16 %v1066, %v1066
          %v1083 = vpack.c.b16 %v1067, %v1067
          %v1084 = vpack.c.b16 %v1068, %v1068
          %v1085 = vpack.c.b16 %v1069, %v1069
          %v1086 = vpack.c.b16 %v1070, %v1070
          %s1103 = sshra.s32 %s1038, 3
          %s1104 = sand.u32 %s1038, 7
          %s1105 = smul.addr %s1103, 4
          %s1106 = scalar_lea.vmem [#allocation2], %s1105
          %1107 = vst [vmem:[%s1106] sm:$0xf] %v1071
          %1108 = vst [vmem:[%s1106 + $0x4] sm:$0xf] %v1072
          %1109 = vst [vmem:[%s1106 + $0x8] sm:$0xf] %v1073
          %1110 = vst [vmem:[%s1106 + $0xc] sm:$0xf] %v1074
          %1111 = vst [vmem:[%s1106 + $0x10] sm:$0xf] %v1075
          %1112 = vst [vmem:[%s1106 + $0x14] sm:$0xf] %v1076
          %1113 = vst [vmem:[%s1106 + $0x18] sm:$0xf] %v1077
          %1114 = vst [vmem:[%s1106 + $0x1c] sm:$0xf] %v1078
          %1115 = vst [vmem:[%s1106 + $0x20] sm:$0xf] %v1079
          %1116 = vst [vmem:[%s1106 + $0x24] sm:$0xf] %v1080
          %1117 = vst [vmem:[%s1106 + $0x28] sm:$0xf] %v1081
          %1118 = vst [vmem:[%s1106 + $0x2c] sm:$0xf] %v1082
          %1119 = vst [vmem:[%s1106 + $0x30] sm:$0xf] %v1083
          %1120 = vst [vmem:[%s1106 + $0x34] sm:$0xf] %v1084
          %1121 = vst [vmem:[%s1106 + $0x38] sm:$0xf] %v1085
          %1122 = vst [vmem:[%s1106 + $0x3c] sm:$0xf] %v1086
          %s1123 = smul.u32 %s29, 8
          %s1124 = scalar_lea.vmem [#allocation4], %s1123
          %v1125 = vld [vmem:[%s1124] sm:$0xff]
          loop: start=0, step=1, limit=16
          $region93: #{tpu_custom_call.1} parent=91 // loop_pre_header
            _
          $region94: #{tpu_custom_call.1} parent=91 // loop_header
            %s1127 = sphi 0, %s1131
            %p1128 = scmp.ge.s32.totalorder %s1127, 16
            %v1132 = vphi %v1125, %v1308
          $region95: #{tpu_custom_call.1} parent=91 // loop_header_branch
            %1130 = sbr.rel (%p1128) target = $region99
          $region96: #{tpu_custom_call.1} parent=91 // loop_body
            %s1133 = smul.u32 %s1127, 8
            %s1134 = sadd.s32 %s1038, %s1133
            %s1135 = sshra.s32 %s1134, 3
            %s1136 = sand.u32 %s1134, 7
            %s1137 = smul.addr %s1135, 4
            %s1138 = scalar_lea.vmem [#allocation2], %s1137
            %v1139 = vld [vmem:[%s1138] sm:$0xf]
            %v1140 = vunpack.c.l.bf16 %v1139
            %s1141 = sshra.s32 %s1133, 3
            %s1142 = sand.u32 %s1133, 7
            %s1143 = smul.addr %s1141, 4
            %s1144 = scalar_lea.vmem %s479, %s1143
            %v1145 = vld [vmem:[%s1144] sm:$0xf]
            %v1146 = vunpack.c.l.bf16 %v1145
            %v1147 = vlaneseq
            %v1148 = vshrl.u32 %v1147, 7
            %v1149 = vsub.s32 0, %v1148
            %v1150 = vrot.slane %v1146, %v1149
            %1152 = vbcast.lane.b32.xlu0 %v1150, 256
            %v1153 = vpop.permute.xlu0 %1152
            %v1154 = vlaneseq
            %v1155 = vshrl.u32 %v1154, 7
            %v1156 = vsub.s32 1, %v1155
            %v1157 = vrot.slane %v1146, %v1156
            %1159 = vbcast.lane.b32.xlu0 %v1157, 256
            %v1160 = vpop.permute.xlu0 %1159
            %v1161 = vlaneseq
            %v1162 = vshrl.u32 %v1161, 7
            %v1163 = vsub.s32 2, %v1162
            %v1164 = vrot.slane %v1146, %v1163
            %1166 = vbcast.lane.b32.xlu0 %v1164, 256
            %v1167 = vpop.permute.xlu0 %1166
            %v1168 = vlaneseq
            %v1169 = vshrl.u32 %v1168, 7
            %v1170 = vsub.s32 3, %v1169
            %v1171 = vrot.slane %v1146, %v1170
            %1173 = vbcast.lane.b32.xlu0 %v1171, 256
            %v1174 = vpop.permute.xlu0 %1173
            %v1175 = vlaneseq
            %v1176 = vshrl.u32 %v1175, 7
            %v1177 = vsub.s32 4, %v1176
            %v1178 = vrot.slane %v1146, %v1177
            %1180 = vbcast.lane.b32.xlu0 %v1178, 256
            %v1181 = vpop.permute.xlu0 %1180
            %v1182 = vlaneseq
            %v1183 = vshrl.u32 %v1182, 7
            %v1184 = vsub.s32 5, %v1183
            %v1185 = vrot.slane %v1146, %v1184
            %1187 = vbcast.lane.b32.xlu0 %v1185, 256
            %v1188 = vpop.permute.xlu0 %1187
            %v1189 = vlaneseq
            %v1190 = vshrl.u32 %v1189, 7
            %v1191 = vsub.s32 6, %v1190
            %v1192 = vrot.slane %v1146, %v1191
            %1194 = vbcast.lane.b32.xlu0 %v1192, 256
            %v1195 = vpop.permute.xlu0 %1194
            %v1196 = vlaneseq
            %v1197 = vshrl.u32 %v1196, 7
            %v1198 = vsub.s32 7, %v1197
            %v1199 = vrot.slane %v1146, %v1198
            %1201 = vbcast.lane.b32.xlu0 %v1199, 256
            %v1202 = vpop.permute.xlu0 %1201
            %v1204 = vcombine.high %v1140, %v1140
            %v1206 = vunpack.c.l.s4 1966171168
            %v1207 = vunpack.c.0.s8 %v1206
            %v1208 = vlaneseq
            %v1209 = vshrl.u32 %v1208, 7
            %v1210 = vsub.s32 %v1207, %v1209
            %v1211 = vrot.slane %v1140, %v1210
            %v1213 = vunpack.c.l.s4 1966171168
            %v1214 = vunpack.c.0.s8 %v1213
            %v1215 = vlaneseq
            %v1216 = vshrl.u32 %v1215, 7
            %v1217 = vsub.s32 %v1214, %v1216
            %v1218 = vrot.slane %v1204, %v1217
            %v1219 = vcombine.high %v1211, %v1211
            %v1220 = vcombine.high %v1218, %v1218
            %v1222 = vunpack.c.l.s4 1966171168
            %v1223 = vunpack.c.0.s8 %v1222
            %v1224 = vlaneseq
            %v1225 = vshrl.u32 %v1224, 7
            %v1226 = vsub.s32 %v1223, %v1225
            %v1227 = vrot.slane %v1211, %v1226
            %v1229 = vunpack.c.l.s4 1966171168
            %v1230 = vunpack.c.0.s8 %v1229
            %v1231 = vlaneseq
            %v1232 = vshrl.u32 %v1231, 7
            %v1233 = vsub.s32 %v1230, %v1232
            %v1234 = vrot.slane %v1218, %v1233
            %v1236 = vunpack.c.l.s4 1966171168
            %v1237 = vunpack.c.0.s8 %v1236
            %v1238 = vlaneseq
            %v1239 = vshrl.u32 %v1238, 7
            %v1240 = vsub.s32 %v1237, %v1239
            %v1241 = vrot.slane %v1219, %v1240
            %v1243 = vunpack.c.l.s4 1966171168
            %v1244 = vunpack.c.0.s8 %v1243
            %v1245 = vlaneseq
            %v1246 = vshrl.u32 %v1245, 7
            %v1247 = vsub.s32 %v1244, %v1246
            %v1248 = vrot.slane %v1220, %v1247
            %v1249 = vcombine.high %v1227, %v1227
            %v1250 = vcombine.high %v1234, %v1234
            %v1251 = vcombine.high %v1241, %v1241
            %v1252 = vcombine.high %v1248, %v1248
            %v1253 = vlaneseq
            %v1254 = vshrl.u32 %v1253, 7
            %v1255 = vsub.s32 0, %v1254
            %v1256 = vrot.slane %v1227, %v1255
            %v1257 = vlaneseq
            %v1258 = vshrl.u32 %v1257, 7
            %v1259 = vsub.s32 0, %v1258
            %v1260 = vrot.slane %v1241, %v1259
            %v1261 = vlaneseq
            %v1262 = vshrl.u32 %v1261, 7
            %v1263 = vsub.s32 0, %v1262
            %v1264 = vrot.slane %v1249, %v1263
            %v1265 = vlaneseq
            %v1266 = vshrl.u32 %v1265, 7
            %v1267 = vsub.s32 0, %v1266
            %v1268 = vrot.slane %v1251, %v1267
            %v1269 = vlaneseq
            %v1270 = vshrl.u32 %v1269, 7
            %v1271 = vsub.s32 0, %v1270
            %v1272 = vrot.slane %v1234, %v1271
            %v1273 = vlaneseq
            %v1274 = vshrl.u32 %v1273, 7
            %v1275 = vsub.s32 0, %v1274
            %v1276 = vrot.slane %v1248, %v1275
            %v1277 = vlaneseq
            %v1278 = vshrl.u32 %v1277, 7
            %v1279 = vsub.s32 0, %v1278
            %v1280 = vrot.slane %v1250, %v1279
            %v1281 = vlaneseq
            %v1282 = vshrl.u32 %v1281, 7
            %v1283 = vsub.s32 0, %v1282
            %v1284 = vrot.slane %v1252, %v1283
            %v1293 = vmul.f32 %v1153, %v1256
            %v1294 = vmul.f32 %v1160, %v1260
            %v1295 = vmul.f32 %v1167, %v1264
            %v1296 = vmul.f32 %v1174, %v1268
            %v1297 = vmul.f32 %v1181, %v1272
            %v1298 = vmul.f32 %v1188, %v1276
            %v1299 = vmul.f32 %v1195, %v1280
            %v1300 = vmul.f32 %v1202, %v1284
            %v1301 = vmax.f32 %v1293, %v1297
            %v1302 = vmax.f32 %v1294, %v1298
            %v1303 = vmax.f32 %v1295, %v1299
            %v1304 = vmax.f32 %v1296, %v1300
            %v1305 = vmax.f32 %v1301, %v1302
            %v1306 = vmax.f32 %v1303, %v1304
            %v1307 = vmax.f32 %v1305, %v1306
            %v1308 = vmax.f32 %v1132, %v1307
          $region97: #{tpu_custom_call.1} parent=91 // loop_footer
            %s1131 = sadd.s32 1, %s1127
          $region98: #{tpu_custom_call.1} parent=91 // loop_footer_branch
            %1126 = sbr.rel target = $region94
          $region99: #{tpu_custom_call.1} parent=91 // loop_exit
            _
          %1309 = vst [vmem:[%s1124] sm:$0xff] %v1132
        $region92: #{tpu_custom_call.1} parent=55 // pred_fallthru
          _
        %p1310 = scmp.eq.s32.totalorder %s29, 1
        %p1311 = pnand %p1310, %p487
        %p1312 = pneg %p1311
        %p1313 = pnand %p1312, %p490
        %p1314 = pneg %p1313
        // Predicated region
        $region100: #{tpu_custom_call.1} parent=55 // pred_check
          _
        $region101: #{tpu_custom_call.1} parent=55 // pred_check_branch
          %1316 = sbr.rel (%p1313) target = $region103
        $region102: #{tpu_custom_call.1} parent=55 // pred_region
          %v1317 = vld [vmem:[#allocation4] sm:$0xff]
          %v1318 = vpack.c.bf16 %v1317, %v1317
          %v1319 = vld [vmem:[#allocation11] sm:$0xf]
          %v1320 = vld [vmem:[#allocation11 + $0x4] sm:$0xf]
          %v1321 = vld [vmem:[#allocation11 + $0x8] sm:$0xf]
          %v1322 = vld [vmem:[#allocation11 + $0xc] sm:$0xf]
          %v1323 = vld [vmem:[#allocation11 + $0x10] sm:$0xf]
          %v1324 = vld [vmem:[#allocation11 + $0x14] sm:$0xf]
          %v1325 = vld [vmem:[#allocation11 + $0x18] sm:$0xf]
          %v1326 = vld [vmem:[#allocation11 + $0x1c] sm:$0xf]
          %v1327 = vld [vmem:[#allocation11 + $0x20] sm:$0xf]
          %v1328 = vld [vmem:[#allocation11 + $0x24] sm:$0xf]
          %v1329 = vld [vmem:[#allocation11 + $0x28] sm:$0xf]
          %v1330 = vld [vmem:[#allocation11 + $0x2c] sm:$0xf]
          %v1331 = vld [vmem:[#allocation11 + $0x30] sm:$0xf]
          %v1332 = vld [vmem:[#allocation11 + $0x34] sm:$0xf]
          %v1333 = vld [vmem:[#allocation11 + $0x38] sm:$0xf]
          %v1334 = vld [vmem:[#allocation11 + $0x3c] sm:$0xf]
          %s1335 = scalar_lea.vmem [#allocation4], 8
          %v1336 = vld [vmem:[%s1335] sm:$0xff]
          %v1337 = vpack.c.bf16 %v1336, %v1336
          %s1338 = scalar_lea.vmem [#allocation11], 64
          %v1339 = vld [vmem:[%s1338] sm:$0xf]
          %v1340 = vld [vmem:[%s1338 + $0x4] sm:$0xf]
          %v1341 = vld [vmem:[%s1338 + $0x8] sm:$0xf]
          %v1342 = vld [vmem:[%s1338 + $0xc] sm:$0xf]
          %v1343 = vld [vmem:[%s1338 + $0x10] sm:$0xf]
          %v1344 = vld [vmem:[%s1338 + $0x14] sm:$0xf]
          %v1345 = vld [vmem:[%s1338 + $0x18] sm:$0xf]
          %v1346 = vld [vmem:[%s1338 + $0x1c] sm:$0xf]
          %v1347 = vld [vmem:[%s1338 + $0x20] sm:$0xf]
          %v1348 = vld [vmem:[%s1338 + $0x24] sm:$0xf]
          %v1349 = vld [vmem:[%s1338 + $0x28] sm:$0xf]
          %v1350 = vld [vmem:[%s1338 + $0x2c] sm:$0xf]
          %v1351 = vld [vmem:[%s1338 + $0x30] sm:$0xf]
          %v1352 = vld [vmem:[%s1338 + $0x34] sm:$0xf]
          %v1353 = vld [vmem:[%s1338 + $0x38] sm:$0xf]
          %v1354 = vld [vmem:[%s1338 + $0x3c] sm:$0xf]
          %v1371 = vunpack.c.l.b16 %v1339
          %v1372 = vunpack.c.l.b16 %v1340
          %v1373 = vunpack.c.l.b16 %v1341
          %v1374 = vunpack.c.l.b16 %v1342
          %v1375 = vunpack.c.l.b16 %v1343
          %v1376 = vunpack.c.l.b16 %v1344
          %v1377 = vunpack.c.l.b16 %v1345
          %v1378 = vunpack.c.l.b16 %v1346
          %v1379 = vunpack.c.l.b16 %v1347
          %v1380 = vunpack.c.l.b16 %v1348
          %v1381 = vunpack.c.l.b16 %v1349
          %v1382 = vunpack.c.l.b16 %v1350
          %v1383 = vunpack.c.l.b16 %v1351
          %v1384 = vunpack.c.l.b16 %v1352
          %v1385 = vunpack.c.l.b16 %v1353
          %v1386 = vunpack.c.l.b16 %v1354
          %v1387 = vpack.c.b16 %v1372, %v1371
          %v1388 = vpack.c.b16 %v1374, %v1373
          %v1389 = vpack.c.b16 %v1376, %v1375
          %v1390 = vpack.c.b16 %v1378, %v1377
          %v1391 = vpack.c.b16 %v1380, %v1379
          %v1392 = vpack.c.b16 %v1382, %v1381
          %v1393 = vpack.c.b16 %v1384, %v1383
          %v1394 = vpack.c.b16 %v1386, %v1385
          %1403 = vmatprep.subr.bf16.mxu0 0
          %1404 = vmatpush1.bf16.msra.mxu0 %v1394
          %1405 = vmatprep.subr.bf16.mxu0 0
          %1406 = vmatpush1.bf16.msra.mxu0 %v1393
          %1407 = vmatprep.subr.bf16.mxu0 0
          %1408 = vmatpush1.bf16.msra.mxu0 %v1392
          %1409 = vmatprep.subr.bf16.mxu0 0
          %1410 = vmatpush1.bf16.msra.mxu0 %v1391
          %1411 = vmatprep.subr.bf16.mxu0 0
          %1412 = vmatpush1.bf16.msra.mxu0 %v1390
          %1413 = vmatprep.subr.bf16.mxu0 0
          %1414 = vmatpush1.bf16.msra.mxu0 %v1389
          %1415 = vmatprep.subr.bf16.mxu0 0
          %1416 = vmatpush1.bf16.msra.mxu0 %v1388
          %1417 = vmatprep.subr.bf16.mxu0 0
          %1418 = vmatpush1.bf16.msra.mxu0 %v1387
          %1419 = vmatprep.subr.bf16.mxu0 0
          %1420 = vmatpush2.bf16.msra.mxu0 0
          %1421 = vmatprep.subr.bf16.mxu0 0
          %1422 = vmatpush2.bf16.msra.mxu0 0
          %1423 = vmatprep.subr.bf16.mxu0 0
          %1424 = vmatpush2.bf16.msra.mxu0 0
          %1425 = vmatprep.subr.bf16.mxu0 0
          %1426 = vmatpush2.bf16.msra.mxu0 0
          %1427 = vmatprep.subr.bf16.mxu0 0
          %1428 = vmatpush2.bf16.msra.mxu0 0
          %1429 = vmatprep.subr.bf16.mxu0 0
          %1430 = vmatpush2.bf16.msra.mxu0 0
          %1431 = vmatprep.subr.bf16.mxu0 0
          %1432 = vmatpush2.bf16.msra.mxu0 0
          %1433 = vmatprep.subr.bf16.mxu0 0
          %1434 = vmatpush2.bf16.msra.mxu0 0
          %1435 = vmatprep.mubr.bf16.mxu0 0
          %1436 = vmatmul.mubr.bf16.gmra.mxu0 %v1337
          %v1437 = vpop.f32.mrf.mxu0
          %v1438 = vadd.f32 0.0, %v1437
          %v1439 = vpop.f32.mrf.mxu0
          %v1440 = vpop.f32.mrf.mxu0
          %v1441 = vpop.f32.mrf.mxu0
          %1442 = vdwg.mxu0
          %v1459 = vunpack.c.l.b16 %v1319
          %v1460 = vunpack.c.l.b16 %v1320
          %v1461 = vunpack.c.l.b16 %v1321
          %v1462 = vunpack.c.l.b16 %v1322
          %v1463 = vunpack.c.l.b16 %v1323
          %v1464 = vunpack.c.l.b16 %v1324
          %v1465 = vunpack.c.l.b16 %v1325
          %v1466 = vunpack.c.l.b16 %v1326
          %v1467 = vunpack.c.l.b16 %v1327
          %v1468 = vunpack.c.l.b16 %v1328
          %v1469 = vunpack.c.l.b16 %v1329
          %v1470 = vunpack.c.l.b16 %v1330
          %v1471 = vunpack.c.l.b16 %v1331
          %v1472 = vunpack.c.l.b16 %v1332
          %v1473 = vunpack.c.l.b16 %v1333
          %v1474 = vunpack.c.l.b16 %v1334
          %v1475 = vpack.c.b16 %v1460, %v1459
          %v1476 = vpack.c.b16 %v1462, %v1461
          %v1477 = vpack.c.b16 %v1464, %v1463
          %v1478 = vpack.c.b16 %v1466, %v1465
          %v1479 = vpack.c.b16 %v1468, %v1467
          %v1480 = vpack.c.b16 %v1470, %v1469
          %v1481 = vpack.c.b16 %v1472, %v1471
          %v1482 = vpack.c.b16 %v1474, %v1473
          %1491 = vmatprep.subr.bf16.mxu0 0
          %1492 = vmatpush1.bf16.msra.mxu0 %v1482
          %1493 = vmatprep.subr.bf16.mxu0 0
          %1494 = vmatpush1.bf16.msra.mxu0 %v1481
          %1495 = vmatprep.subr.bf16.mxu0 0
          %1496 = vmatpush1.bf16.msra.mxu0 %v1480
          %1497 = vmatprep.subr.bf16.mxu0 0
          %1498 = vmatpush1.bf16.msra.mxu0 %v1479
          %1499 = vmatprep.subr.bf16.mxu0 0
          %1500 = vmatpush1.bf16.msra.mxu0 %v1478
          %1501 = vmatprep.subr.bf16.mxu0 0
          %1502 = vmatpush1.bf16.msra.mxu0 %v1477
          %1503 = vmatprep.subr.bf16.mxu0 0
          %1504 = vmatpush1.bf16.msra.mxu0 %v1476
          %1505 = vmatprep.subr.bf16.mxu0 0
          %1506 = vmatpush1.bf16.msra.mxu0 %v1475
          %1507 = vmatprep.subr.bf16.mxu0 0
          %1508 = vmatpush2.bf16.msra.mxu0 0
          %1509 = vmatprep.subr.bf16.mxu0 0
          %1510 = vmatpush2.bf16.msra.mxu0 0
          %1511 = vmatprep.subr.bf16.mxu0 0
          %1512 = vmatpush2.bf16.msra.mxu0 0
          %1513 = vmatprep.subr.bf16.mxu0 0
          %1514 = vmatpush2.bf16.msra.mxu0 0
          %1515 = vmatprep.subr.bf16.mxu0 0
          %1516 = vmatpush2.bf16.msra.mxu0 0
          %1517 = vmatprep.subr.bf16.mxu0 0
          %1518 = vmatpush2.bf16.msra.mxu0 0
          %1519 = vmatprep.subr.bf16.mxu0 0
          %1520 = vmatpush2.bf16.msra.mxu0 0
          %1521 = vmatprep.subr.bf16.mxu0 0
          %1522 = vmatpush2.bf16.msra.mxu0 0
          %1523 = vmatprep.mubr.bf16.mxu0 0
          %1524 = vmatmul.mubr.bf16.gmra.mxu0 %v1318
          %v1525 = vpop.f32.mrf.mxu0
          %v1526 = vadd.f32 %v1438, %v1525
          %v1527 = vpop.f32.mrf.mxu0
          %v1528 = vpop.f32.mrf.mxu0
          %v1529 = vpop.f32.mrf.mxu0
          %1530 = vdwg.mxu0
          %v1531 = vld [vmem:[%s8 + $0x2] sm:$0x1]
          %v1532 = vlaneseq
          %v1533 = vshrl.u32 %v1532, 7
          %v1534 = vsub.s32 0, %v1533
          %v1535 = vrot.slane %v1531, %v1534
          %v1536 = vadd.f32 %v1526, %v1535
          %v1537 = vld [vmem:[%s8 + $0x3] sm:$0x1]
          %v1538 = vld [vmem:[%s8 + $0x4] sm:$0x1]
          %v1539 = vld [vmem:[%s8 + $0x5] sm:$0x1]
          %v1540 = vlaneseq
          %v1541 = vshrl.u32 %v1540, 7
          %v1542 = vsub.s32 0, %v1541
          %v1543 = vrot.slane %v1539, %v1542
          %v1544 = vmul.f32 %v1536, %v1543
          %1545 = vadd.xlane.f32.xlu0 %v1544
          %v1546 = vpop.xlane.xlu0 %1545
          %v1547 = vmul.f32 %v1546, 0.0625
          %v1548 = vsub.f32 %v1536, %v1547
          %v1549 = vmul.f32 %v1548, %v1543
          %v1550 = vmul.f32 %v1549, %v1549
          %1551 = vadd.xlane.f32.xlu0 %v1550
          %v1552 = vpop.xlane.xlu0 %1551
          %v1553 = vmul.f32 %v1552, 0.0625
          %v1554 = vadd.f32 %v1553, 1e-05
          %v1555 = vrsqrt.pop %v1554
          %v1556 = vmul.f32 %v1549, %v1555
          %v1557 = vlaneseq
          %v1558 = vshrl.u32 %v1557, 7
          %v1559 = vsub.s32 0, %v1558
          %v1560 = vrot.slane %v1537, %v1559
          %v1561 = vmul.f32 %v1556, %v1560
          %v1562 = vlaneseq
          %v1563 = vshrl.u32 %v1562, 7
          %v1564 = vsub.s32 0, %v1563
          %v1565 = vrot.slane %v1538, %v1564
          %v1566 = vadd.f32 %v1561, %v1565
          %v1567 = vmax.f32 %v1566, 0.0
          %v1568 = vld [vmem:[#allocation8] sm:$0xff]
          %v1569 = vpack.c.bf16 %v1568, %v1568
          %v1570 = vld [vmem:[#allocation12] sm:$0xf]
          %v1571 = vld [vmem:[#allocation12 + $0x4] sm:$0xf]
          %v1572 = vld [vmem:[#allocation12 + $0x8] sm:$0xf]
          %v1573 = vld [vmem:[#allocation12 + $0xc] sm:$0xf]
          %v1574 = vld [vmem:[#allocation12 + $0x10] sm:$0xf]
          %v1575 = vld [vmem:[#allocation12 + $0x14] sm:$0xf]
          %v1576 = vld [vmem:[#allocation12 + $0x18] sm:$0xf]
          %v1577 = vld [vmem:[#allocation12 + $0x1c] sm:$0xf]
          %v1578 = vld [vmem:[#allocation12 + $0x20] sm:$0xf]
          %v1579 = vld [vmem:[#allocation12 + $0x24] sm:$0xf]
          %v1580 = vld [vmem:[#allocation12 + $0x28] sm:$0xf]
          %v1581 = vld [vmem:[#allocation12 + $0x2c] sm:$0xf]
          %v1582 = vld [vmem:[#allocation12 + $0x30] sm:$0xf]
          %v1583 = vld [vmem:[#allocation12 + $0x34] sm:$0xf]
          %v1584 = vld [vmem:[#allocation12 + $0x38] sm:$0xf]
          %v1585 = vld [vmem:[#allocation12 + $0x3c] sm:$0xf]
          %v1586 = vld [vmem:[%s8 + $0x6] sm:$0x1]
          %v1587 = vlaneseq
          %v1588 = vshrl.u32 %v1587, 7
          %v1589 = vsub.s32 0, %v1588
          %v1590 = vrot.slane %v1586, %v1589
          %v1607 = vunpack.c.l.b16 %v1570
          %v1608 = vunpack.c.l.b16 %v1571
          %v1609 = vunpack.c.l.b16 %v1572
          %v1610 = vunpack.c.l.b16 %v1573
          %v1611 = vunpack.c.l.b16 %v1574
          %v1612 = vunpack.c.l.b16 %v1575
          %v1613 = vunpack.c.l.b16 %v1576
          %v1614 = vunpack.c.l.b16 %v1577
          %v1615 = vunpack.c.l.b16 %v1578
          %v1616 = vunpack.c.l.b16 %v1579
          %v1617 = vunpack.c.l.b16 %v1580
          %v1618 = vunpack.c.l.b16 %v1581
          %v1619 = vunpack.c.l.b16 %v1582
          %v1620 = vunpack.c.l.b16 %v1583
          %v1621 = vunpack.c.l.b16 %v1584
          %v1622 = vunpack.c.l.b16 %v1585
          %v1623 = vpack.c.b16 %v1608, %v1607
          %v1624 = vpack.c.b16 %v1610, %v1609
          %v1625 = vpack.c.b16 %v1612, %v1611
          %v1626 = vpack.c.b16 %v1614, %v1613
          %v1627 = vpack.c.b16 %v1616, %v1615
          %v1628 = vpack.c.b16 %v1618, %v1617
          %v1629 = vpack.c.b16 %v1620, %v1619
          %v1630 = vpack.c.b16 %v1622, %v1621
          %1639 = vmatprep.subr.bf16.mxu0 0
          %1640 = vmatpush1.bf16.msra.mxu0 %v1630
          %1641 = vmatprep.subr.bf16.mxu0 0
          %1642 = vmatpush1.bf16.msra.mxu0 %v1629
          %1643 = vmatprep.subr.bf16.mxu0 0
          %1644 = vmatpush1.bf16.msra.mxu0 %v1628
          %1645 = vmatprep.subr.bf16.mxu0 0
          %1646 = vmatpush1.bf16.msra.mxu0 %v1627
          %1647 = vmatprep.subr.bf16.mxu0 0
          %1648 = vmatpush1.bf16.msra.mxu0 %v1626
          %1649 = vmatprep.subr.bf16.mxu0 0
          %1650 = vmatpush1.bf16.msra.mxu0 %v1625
          %1651 = vmatprep.subr.bf16.mxu0 0
          %1652 = vmatpush1.bf16.msra.mxu0 %v1624
          %1653 = vmatprep.subr.bf16.mxu0 0
          %1654 = vmatpush1.bf16.msra.mxu0 %v1623
          %1655 = vmatprep.subr.bf16.mxu0 0
          %1656 = vmatpush2.bf16.msra.mxu0 0
          %1657 = vmatprep.subr.bf16.mxu0 0
          %1658 = vmatpush2.bf16.msra.mxu0 0
          %1659 = vmatprep.subr.bf16.mxu0 0
          %1660 = vmatpush2.bf16.msra.mxu0 0
          %1661 = vmatprep.subr.bf16.mxu0 0
          %1662 = vmatpush2.bf16.msra.mxu0 0
          %1663 = vmatprep.subr.bf16.mxu0 0
          %1664 = vmatpush2.bf16.msra.mxu0 0
          %1665 = vmatprep.subr.bf16.mxu0 0
          %1666 = vmatpush2.bf16.msra.mxu0 0
          %1667 = vmatprep.subr.bf16.mxu0 0
          %1668 = vmatpush2.bf16.msra.mxu0 0
          %1669 = vmatprep.subr.bf16.mxu0 0
          %1670 = vmatpush2.bf16.msra.mxu0 0
          %1671 = vmatprep.mubr.bf16.mxu0 0
          %1672 = vmatmul.mubr.bf16.gmra.mxu0 %v1569
          %v1673 = vpop.f32.mrf.mxu0
          %v1674 = vadd.f32 %v1590, %v1673
          %v1675 = vpop.f32.mrf.mxu0
          %v1676 = vpop.f32.mrf.mxu0
          %v1677 = vpop.f32.mrf.mxu0
          %1678 = vdwg.mxu0
          %v1679 = vld [vmem:[%s8 + $0x7] sm:$0x1]
          %v1680 = vld [vmem:[%s8 + $0x8] sm:$0x1]
          %v1681 = vld [vmem:[%s8 + $0x9] sm:$0x1]
          %v1682 = vlaneseq
          %v1683 = vshrl.u32 %v1682, 7
          %v1684 = vsub.s32 0, %v1683
          %v1685 = vrot.slane %v1681, %v1684
          %v1686 = vmul.f32 %v1674, %v1685
          %1687 = vadd.xlane.f32.xlu0 %v1686
          %v1688 = vpop.xlane.xlu0 %1687
          %v1689 = vmul.f32 %v1688, 0.125
          %v1690 = vsub.f32 %v1674, %v1689
          %v1691 = vmul.f32 %v1690, %v1685
          %v1692 = vmul.f32 %v1691, %v1691
          %1693 = vadd.xlane.f32.xlu0 %v1692
          %v1694 = vpop.xlane.xlu0 %1693
          %v1695 = vmul.f32 %v1694, 0.125
          %v1696 = vadd.f32 %v1695, 1e-05
          %v1697 = vrsqrt.pop %v1696
          %v1698 = vmul.f32 %v1691, %v1697
          %v1699 = vlaneseq
          %v1700 = vshrl.u32 %v1699, 7
          %v1701 = vsub.s32 0, %v1700
          %v1702 = vrot.slane %v1679, %v1701
          %v1703 = vmul.f32 %v1698, %v1702
          %v1704 = vlaneseq
          %v1705 = vshrl.u32 %v1704, 7
          %v1706 = vsub.s32 0, %v1705
          %v1707 = vrot.slane %v1680, %v1706
          %v1708 = vadd.f32 %v1703, %v1707
          %v1709 = vmax.f32 %v1708, 0.0
          %v1710 = vpack.c.bf16 %v1567, %v1567
          %v1711 = vpack.c.bf16 %v1709, %v1709
          %v1712 = vld [vmem:[#allocation14] sm:$0xf]
          %v1713 = vld [vmem:[#allocation14 + $0x4] sm:$0xf]
          %v1714 = vld [vmem:[#allocation14 + $0x8] sm:$0xf]
          %v1715 = vld [vmem:[#allocation14 + $0xc] sm:$0xf]
          %v1716 = vld [vmem:[#allocation14 + $0x10] sm:$0xf]
          %v1717 = vld [vmem:[#allocation14 + $0x14] sm:$0xf]
          %v1718 = vld [vmem:[#allocation14 + $0x18] sm:$0xf]
          %v1719 = vld [vmem:[#allocation14 + $0x1c] sm:$0xf]
          %v1720 = vld [vmem:[#allocation14 + $0x20] sm:$0xf]
          %v1721 = vld [vmem:[#allocation14 + $0x24] sm:$0xf]
          %v1722 = vld [vmem:[#allocation14 + $0x28] sm:$0xf]
          %v1723 = vld [vmem:[#allocation14 + $0x2c] sm:$0xf]
          %v1724 = vld [vmem:[#allocation14 + $0x30] sm:$0xf]
          %v1725 = vld [vmem:[#allocation14 + $0x34] sm:$0xf]
          %v1726 = vld [vmem:[#allocation14 + $0x38] sm:$0xf]
          %v1727 = vld [vmem:[#allocation14 + $0x3c] sm:$0xf]
          %v1728 = vld [vmem:[#allocation14 + $0x40] sm:$0xf]
          %v1729 = vld [vmem:[#allocation14 + $0x44] sm:$0xf]
          %v1730 = vld [vmem:[#allocation14 + $0x48] sm:$0xf]
          %v1731 = vld [vmem:[#allocation14 + $0x4c] sm:$0xf]
          %v1732 = vld [vmem:[#allocation14 + $0x50] sm:$0xf]
          %v1733 = vld [vmem:[#allocation14 + $0x54] sm:$0xf]
          %v1734 = vld [vmem:[#allocation14 + $0x58] sm:$0xf]
          %v1735 = vld [vmem:[#allocation14 + $0x5c] sm:$0xf]
          %v1736 = vld [vmem:[#allocation14 + $0x60] sm:$0xf]
          %v1737 = vld [vmem:[#allocation14 + $0x64] sm:$0xf]
          %v1738 = vld [vmem:[#allocation14 + $0x68] sm:$0xf]
          %v1739 = vld [vmem:[#allocation14 + $0x6c] sm:$0xf]
          %v1740 = vld [vmem:[#allocation14 + $0x70] sm:$0xf]
          %v1741 = vld [vmem:[#allocation14 + $0x74] sm:$0xf]
          %v1742 = vld [vmem:[#allocation14 + $0x78] sm:$0xf]
          %v1743 = vld [vmem:[#allocation14 + $0x7c] sm:$0xf]
          %v1744 = vld [vmem:[%s8 + $0xa] sm:$0x1]
          %v1745 = vlaneseq
          %v1746 = vshrl.u32 %v1745, 7
          %v1747 = vsub.s32 0, %v1746
          %v1748 = vrot.slane %v1744, %v1747
          %v1781 = vunpack.c.l.b16 %v1712
          %v1782 = vunpack.c.l.b16 %v1713
          %v1783 = vunpack.c.l.b16 %v1714
          %v1784 = vunpack.c.l.b16 %v1715
          %v1785 = vunpack.c.l.b16 %v1716
          %v1786 = vunpack.c.l.b16 %v1717
          %v1787 = vunpack.c.l.b16 %v1718
          %v1788 = vunpack.c.l.b16 %v1719
          %v1789 = vunpack.c.l.b16 %v1720
          %v1790 = vunpack.c.l.b16 %v1721
          %v1791 = vunpack.c.l.b16 %v1722
          %v1792 = vunpack.c.l.b16 %v1723
          %v1793 = vunpack.c.l.b16 %v1724
          %v1794 = vunpack.c.l.b16 %v1725
          %v1795 = vunpack.c.l.b16 %v1726
          %v1796 = vunpack.c.l.b16 %v1727
          %v1797 = vunpack.c.l.b16 %v1728
          %v1798 = vunpack.c.l.b16 %v1729
          %v1799 = vunpack.c.l.b16 %v1730
          %v1800 = vunpack.c.l.b16 %v1731
          %v1801 = vunpack.c.l.b16 %v1732
          %v1802 = vunpack.c.l.b16 %v1733
          %v1803 = vunpack.c.l.b16 %v1734
          %v1804 = vunpack.c.l.b16 %v1735
          %v1805 = vunpack.c.l.b16 %v1736
          %v1806 = vunpack.c.l.b16 %v1737
          %v1807 = vunpack.c.l.b16 %v1738
          %v1808 = vunpack.c.l.b16 %v1739
          %v1809 = vunpack.c.l.b16 %v1740
          %v1810 = vunpack.c.l.b16 %v1741
          %v1811 = vunpack.c.l.b16 %v1742
          %v1812 = vunpack.c.l.b16 %v1743
          %v1813 = vpack.c.b16 %v1782, %v1781
          %v1814 = vpack.c.b16 %v1784, %v1783
          %v1815 = vpack.c.b16 %v1786, %v1785
          %v1816 = vpack.c.b16 %v1788, %v1787
          %v1817 = vpack.c.b16 %v1790, %v1789
          %v1818 = vpack.c.b16 %v1792, %v1791
          %v1819 = vpack.c.b16 %v1794, %v1793
          %v1820 = vpack.c.b16 %v1796, %v1795
          %v1821 = vpack.c.b16 %v1798, %v1797
          %v1822 = vpack.c.b16 %v1800, %v1799
          %v1823 = vpack.c.b16 %v1802, %v1801
          %v1824 = vpack.c.b16 %v1804, %v1803
          %v1825 = vpack.c.b16 %v1806, %v1805
          %v1826 = vpack.c.b16 %v1808, %v1807
          %v1827 = vpack.c.b16 %v1810, %v1809
          %v1828 = vpack.c.b16 %v1812, %v1811
          %1845 = vmatprep.subr.bf16.mxu0 0
          %1846 = vmatpush1.bf16.msra.mxu0 %v1820
          %1847 = vmatprep.subr.bf16.mxu0 0
          %1848 = vmatpush1.bf16.msra.mxu0 %v1819
          %1849 = vmatprep.subr.bf16.mxu0 0
          %1850 = vmatpush1.bf16.msra.mxu0 %v1818
          %1851 = vmatprep.subr.bf16.mxu0 0
          %1852 = vmatpush1.bf16.msra.mxu0 %v1817
          %1853 = vmatprep.subr.bf16.mxu0 0
          %1854 = vmatpush1.bf16.msra.mxu0 %v1816
          %1855 = vmatprep.subr.bf16.mxu0 0
          %1856 = vmatpush1.bf16.msra.mxu0 %v1815
          %1857 = vmatprep.subr.bf16.mxu0 0
          %1858 = vmatpush1.bf16.msra.mxu0 %v1814
          %1859 = vmatprep.subr.bf16.mxu0 0
          %1860 = vmatpush1.bf16.msra.mxu0 %v1813
          %1861 = vmatprep.subr.bf16.mxu0 0
          %1862 = vmatpush2.bf16.msra.mxu0 %v1828
          %1863 = vmatprep.subr.bf16.mxu0 0
          %1864 = vmatpush2.bf16.msra.mxu0 %v1827
          %1865 = vmatprep.subr.bf16.mxu0 0
          %1866 = vmatpush2.bf16.msra.mxu0 %v1826
          %1867 = vmatprep.subr.bf16.mxu0 0
          %1868 = vmatpush2.bf16.msra.mxu0 %v1825
          %1869 = vmatprep.subr.bf16.mxu0 0
          %1870 = vmatpush2.bf16.msra.mxu0 %v1824
          %1871 = vmatprep.subr.bf16.mxu0 0
          %1872 = vmatpush2.bf16.msra.mxu0 %v1823
          %1873 = vmatprep.subr.bf16.mxu0 0
          %1874 = vmatpush2.bf16.msra.mxu0 %v1822
          %1875 = vmatprep.subr.bf16.mxu0 0
          %1876 = vmatpush2.bf16.msra.mxu0 %v1821
          %1877 = vmatprep.mubr.bf16.mxu0 %v1711
          %1878 = vmatmul.mubr.bf16.gmra.mxu0 %v1710
          %v1879 = vpop.f32.mrf.mxu0
          %v1880 = vadd.f32 %v1748, %v1879
          %v1881 = vpop.f32.mrf.mxu0
          %v1882 = vpop.f32.mrf.mxu0
          %v1883 = vpop.f32.mrf.mxu0
          %1884 = vdwg.mxu0
          %v1885 = vld [vmem:[%s8 + $0xb] sm:$0x1]
          %v1886 = vld [vmem:[%s8 + $0xc] sm:$0x1]
          %v1887 = vld [vmem:[%s8 + $0xd] sm:$0x1]
          %v1888 = vlaneseq
          %v1889 = vshrl.u32 %v1888, 7
          %v1890 = vsub.s32 0, %v1889
          %v1891 = vrot.slane %v1887, %v1890
          %v1892 = vmul.f32 %v1880, %v1891
          %1893 = vadd.xlane.f32.xlu0 %v1892
          %v1894 = vpop.xlane.xlu0 %1893
          %v1895 = vmul.f32 %v1894, 0.33333334
          %v1896 = vsub.f32 %v1880, %v1895
          %v1897 = vmul.f32 %v1896, %v1891
          %v1898 = vmul.f32 %v1897, %v1897
          %1899 = vadd.xlane.f32.xlu0 %v1898
          %v1900 = vpop.xlane.xlu0 %1899
          %v1901 = vmul.f32 %v1900, 0.33333334
          %v1902 = vadd.f32 %v1901, 1e-05
          %v1903 = vrsqrt.pop %v1902
          %v1904 = vmul.f32 %v1897, %v1903
          %v1905 = vlaneseq
          %v1906 = vshrl.u32 %v1905, 7
          %v1907 = vsub.s32 0, %v1906
          %v1908 = vrot.slane %v1885, %v1907
          %v1909 = vmul.f32 %v1904, %v1908
          %v1910 = vlaneseq
          %v1911 = vshrl.u32 %v1910, 7
          %v1912 = vsub.s32 0, %v1911
          %v1913 = vrot.slane %v1886, %v1912
          %v1914 = vadd.f32 %v1909, %v1913
          %1915 = vst [vmem:[#allocation15] sm:$0xff] %v1914
        $region103: #{tpu_custom_call.1} parent=55 // pred_fallthru
          _
        // Predicated region
        $region104: #{tpu_custom_call.1} parent=55 // pred_check
          %p1916 = pneg %p262
        $region105: #{tpu_custom_call.1} parent=55 // pred_check_branch
          %1918 = sbr.rel (%p1916) target = $region107
        $region106: #{tpu_custom_call.1} parent=55 // pred_region
          %s1920 = ssub.s32 128, 128
          %1921 = vsyncadd [#allocation7], %s1920
          %s1923 = sshll.u32 [#allocation15], 4
          %s1924 = int_to_ptr.vmem [resolvable:$true] %s1923
          %1926 = dma.vmem_to_hbm [thread:$0]  %s1924, 128, %s9, [#allocation7]
        $region107: #{tpu_custom_call.1} parent=55 // pred_fallthru
          _
        // Predicated region
        $region108: #{tpu_custom_call.1} parent=55 // pred_check
          %p1927 = pneg %p262
        $region109: #{tpu_custom_call.1} parent=55 // pred_check_branch
          %1929 = sbr.rel (%p1927) target = $region111
        $region110: #{tpu_custom_call.1} parent=55 // pred_region
          %1930 = dma.done [#allocation7], 128
        $region111: #{tpu_custom_call.1} parent=55 // pred_fallthru
          _
      $region56: #{tpu_custom_call.1} parent=5 // pred_fallthru
        _
      %p1931 = scmp.le.s32.totalorder 2, %s19
      // Predicated region
      $region112: #{tpu_custom_call.1} parent=5 // pred_check
        %p1932 = pneg %p1931
      $region113: #{tpu_custom_call.1} parent=5 // pred_check_branch
        %1934 = sbr.rel (%p1932) target = $region115
      $region114: #{tpu_custom_call.1} parent=5 // pred_region
        %s1935 = ssub.s32 %s19, 2
      $region115: #{tpu_custom_call.1} parent=5 // pred_fallthru
        _
    $region6: #{tpu_custom_call.1} parent=1 // loop_footer
      %s23 = sadd.s32 1, %s19
    $region7: #{tpu_custom_call.1} parent=1 // loop_footer_branch
      %18 = sbr.rel target = $region3
    $region8: #{tpu_custom_call.1} parent=1 // loop_exit
      _
    %1936 = vsyncpa [#allocation6], 1
    %s1937 = scalar_lea.sflag [#allocation6], 1
    %1938 = vsyncpa %s1937, 1
    %1939 = vsyncpa [#allocation9], 1
    %1940 = vsyncpa [#allocation13], 1
    %1941 = vsyncpa [#allocation7], 1
    %s1942 = scalar_lea.sflag [#allocation7], 1
    %1943 = vsyncpa %s1942, 1

</llo_original>
